<compile_context>
chip_gen: v7x
topology: tpu7x:2x2x1
jax: 0.10.0
libtpu: 0.0.40
codegen_flags: <defaults>
</compile_context>

<pallas_src>
from functools import partial

import numpy as np
import jax
import jax.numpy as jnp
from jax.experimental import pallas as pl
from jax.experimental.pallas import tpu as pltpu

BN_EPS = 1e-5


def _vmem_limit_bytes():
    # Per-chip VMEM budget (v7x: 64 MiB/TC, v5e/v6e: 128 MiB).  Conservative.
    try:
        cap = pltpu.get_tpu_info().vmem_capacity_bytes
        return int(min(cap * 3 // 4, 96 * 1024 * 1024))
    except Exception:
        return 32 * 1024 * 1024


# --------------------------------------------------------------------------
# Wrapper-side im2col (only used for stride != 1 conv1).  Returns NHWC cols.
# --------------------------------------------------------------------------
def _im2col(x_nhwc, ksize, stride, pad):
    N, H, W, C = x_nhwc.shape
    xp = jnp.pad(x_nhwc, ((0, 0), (pad, pad), (pad, pad), (0, 0)))
    Ho = (H + 2 * pad - ksize) // stride + 1
    Wo = (W + 2 * pad - ksize) // stride + 1
    cols = []
    for ky in range(ksize):
        for kx in range(ksize):
            patch = xp[:, ky:ky + (Ho - 1) * stride + 1:stride,
                          kx:kx + (Wo - 1) * stride + 1:stride, :]
            cols.append(patch)
    return jnp.concatenate(cols, axis=-1), Ho, Wo          # (N, Ho, Wo, 9C)


# --------------------------------------------------------------------------
# Kernel helpers.
#
# Row convention: M = Ho*(Wo+2) output rows, r = oy*(Wo+2) + ox with two junk
# columns (ox = Wo, Wo+1) per output row.  This makes every 3x3 tap a
# CONTIGUOUS slab of a flat, zero-padded (rows = (Ho+2)*(Wo+2)) buffer at row
# offset ky*(Wo+2)+kx -> plain aligned vector loads, no strided reshapes.
# --------------------------------------------------------------------------
def _build_conv1_cols(x_ref, col1, Cin, Wp, Mp):
    # im2col for 3x3 / stride-1 conv1 built in VMEM from 9 contiguous shifted
    # slabs of the zero-padded RAW image; the ReLU rides along on the copy.
    for t in range(9):
        ky, kx = divmod(t, 3)
        off = ky * Wp + kx
        col1[:, t * Cin:(t + 1) * Cin] = jnp.maximum(x_ref[off:off + Mp, :], 0.0)


def _conv2_epilogue(Ho, Wo, P, h, skip, mask, w2_ref, b2_ref, hbuf, col2, o_ref):
    # h    : (Mp, 2P) f32 = relu(bn1(conv1)) of BOTH branches over Mp rows.
    # skip : (Mp, P)  f32 shortcut, added in the epilogue.
    # w2   : (18P, P) bf16, tap-major, with 0.5 (eval shake) * BN2 scale folded.
    P2 = 2 * P
    Wp = Wo + 2
    Mp = Ho * Wp
    Mh = hbuf.shape[0]
    head = Wp + 1                                   # top pad row + (1,0) border
    tail = Mh - head - Mp                           # rest of bottom pad row

    # Zero only the border rows that the shifted interior store never touches.
    hbuf[0:head, :] = jnp.zeros((head, P2), jnp.bfloat16)
    hbuf[head + Mp:Mh, :] = jnp.zeros((tail, P2), jnp.bfloat16)
    # Junk columns -> 0, so the shifted store also writes the halo's left/right
    # borders with zeros (the zero border doubles as conv2's padding).
    hbuf[head:head + Mp, :] = (h * mask).astype(jnp.bfloat16)

    # conv2 of both branches as ONE long-K matmul: gather the 9 taps (each a
    # contiguous slab of the flat bf16 halo) into the contraction dimension.
    for t in range(9):
        ky, kx = divmod(t, 3)
        off = ky * Wp + kx
        col2[:, t * P2:(t + 1) * P2] = hbuf[off:off + Mp, :]
    acc = jnp.dot(col2[...], w2_ref[...], preferred_element_type=jnp.float32)
    o_ref[...] = (acc + b2_ref[...] + skip).astype(o_ref.dtype)


# ---- stride == 1, identity skip (inplanes == planes) ----------------------
def _kernel_s1_identity(Cin, Ho, Wo, P, x_ref, mask_ref, w1_ref, b1_ref,
                        w2_ref, b2_ref, o_ref, col1, hbuf, col2):
    Wp = Wo + 2
    Mp = Ho * Wp
    _build_conv1_cols(x_ref, col1, Cin, Wp, Mp)
    h = jnp.dot(col1[...], w1_ref[...], preferred_element_type=jnp.float32)
    h = jnp.maximum(h + b1_ref[...], 0.0)
    # identity skip == center tap of the (raw, non-ReLU'd) padded image.
    skip = x_ref[Wp + 1:Wp + 1 + Mp, :].astype(jnp.float32)
    _conv2_epilogue(Ho, Wo, P, h, skip, mask_ref[...], w2_ref, b2_ref,
                    hbuf, col2, o_ref)


# ---- stride == 1, SkippingBranch (inplanes != planes) ----------------------
def _kernel_s1_skipconv(Cin, Ho, Wo, P, x_ref, mask_ref, w1_ref, b1_ref,
                        w2_ref, b2_ref, wsk_ref, o_ref, col1, hbuf, col2):
    Wp = Wo + 2
    Mp = Ho * Wp
    _build_conv1_cols(x_ref, col1, Cin, Wp, Mp)
    h = jnp.dot(col1[...], w1_ref[...], preferred_element_type=jnp.float32)
    h = jnp.maximum(h + b1_ref[...], 0.0)
    # SkippingBranch (stride 1): 1x1 conv of x and of pad(x[1:,1:]); both are
    # taps of the padded raw image already resident in VMEM (no extra HBM read).
    tapA = x_ref[Wp + 1:Wp + 1 + Mp, :]             # x
    tapB = x_ref[2 * Wp + 2:2 * Wp + 2 + Mp, :]     # shifted x (zero-padded)
    skip = (jnp.dot(tapA, wsk_ref[0], preferred_element_type=jnp.float32)
            + jnp.dot(tapB, wsk_ref[1], preferred_element_type=jnp.float32))
    _conv2_epilogue(Ho, Wo, P, h, skip, mask_ref[...], w2_ref, b2_ref,
                    hbuf, col2, o_ref)


# ---- stride != 1, SkippingBranch (wrapper-side im2col for conv1) -----------
def _kernel_strided_skipconv(Ho, Wo, P, p_ref, sk_ref, mask_ref, w1_ref, b1_ref,
                             w2_ref, b2_ref, wsk_ref, o_ref, hbuf, col2):
    h = jnp.dot(p_ref[...], w1_ref[...], preferred_element_type=jnp.float32)
    h = jnp.maximum(h + b1_ref[...], 0.0)
    skip = jnp.dot(sk_ref[...], wsk_ref[...], preferred_element_type=jnp.float32)
    _conv2_epilogue(Ho, Wo, P, h, skip, mask_ref[...], w2_ref, b2_ref,
                    hbuf, col2, o_ref)


# --------------------------------------------------------------------------
# Full ShakeBlock forward (eval mode), NHWC core + NCHW adapter.
# --------------------------------------------------------------------------
def shake_block_forward_nhwc(x, params, stride):
    N, H, W, Cin = x.shape
    P = params["rb1"]["w1"].shape[0]                        # planes
    has_skip_conv = "skip" in params
    if has_skip_conv:
        assert P == 2 * Cin, "SkippingBranch concat channels must equal planes"
    else:
        assert P == Cin and stride == 1, "identity skip needs inplanes==planes"

    Ho = (H - 1) // stride + 1
    Wo = (W - 1) // stride + 1
    Wp = Wo + 2
    Mp = Ho * Wp                                            # rows incl. 2 junk cols
    Mh = (Ho + 2) * Wp
    Mh_pad = Mh + 8                                         # tap-slab overrun room
    K1 = 9 * Cin
    P2 = 2 * P

    # --- weight folding (f32 math, bf16 cast at the end) -------------------
    def conv1_mat(p):      # (P, Cin, 3, 3) -> (9Cin, P), BN1 scale folded in
        w = jnp.transpose(p["w1"], (2, 3, 1, 0)).reshape(K1, P)
        return w * p["s1"]

    def conv2_taps(p):     # (P, P, 3, 3) -> (9, P, P), 0.5 * BN2 scale folded in
        w = jnp.transpose(p["w2"], (2, 3, 1, 0)).reshape(9, P, P)
        return w * (0.5 * p["s2"])

    rb1, rb2 = params["rb1"], params["rb2"]
    w1 = jnp.concatenate([conv1_mat(rb1), conv1_mat(rb2)],
                         axis=1).astype(jnp.bfloat16)                # (9Cin, 2P)
    b1 = jnp.concatenate([rb1["b1"], rb2["b1"]], axis=1)             # (1, 2P) f32
    w2 = jnp.concatenate([conv2_taps(rb1), conv2_taps(rb2)], axis=1)
    w2 = w2.reshape(9 * P2, P).astype(jnp.bfloat16)                  # (18P, P)
    b2 = 0.5 * (rb1["b2"] + rb2["b2"])                               # (1, P)  f32

    # junk-column mask (the 2 padded output columns per row)
    mask = jnp.asarray(((np.arange(Mp) % Wp) < Wo)
                       .astype(np.float32).reshape(Mp, 1))

    cparams = pltpu.CompilerParams(dimension_semantics=("parallel",),
                                   vmem_limit_bytes=_vmem_limit_bytes())
    out_sds = jax.ShapeDtypeStruct((N, Mp, P), jnp.bfloat16)
    out_spec = pl.BlockSpec((None, Mp, P), lambda n: (n, 0, 0))
    const_specs = [
        pl.BlockSpec((Mp, 1), lambda n: (0, 0)),                     # mask
        pl.BlockSpec((K1, P2), lambda n: (0, 0)),                    # w1
        pl.BlockSpec((1, P2), lambda n: (0, 0)),                     # b1
        pl.BlockSpec((9 * P2, P), lambda n: (0, 0)),                 # w2
        pl.BlockSpec((1, P), lambda n: (0, 0)),                      # b2
    ]
    hbuf_spec = pltpu.VMEM((Mh_pad, P2), jnp.bfloat16)
    col2_spec = pltpu.VMEM((Mp, 9 * P2), jnp.bfloat16)
    wb_bytes = (w1.size + w2.size) * 2 + (b1.size + b2.size + mask.size) * 4
    base_flops = 2 * N * Mp * (K1 * P2 + 9 * P2 * P)

    if stride == 1:
        # Raw (non-ReLU'd) zero-padded image, flattened; conv1/skip in VMEM.
        xpad = jnp.pad(x.astype(jnp.bfloat16), ((0, 0), (1, 1), (1, 1), (0, 0)))
        xflat = xpad.reshape(N, Mh, Cin)
        xflat = jnp.pad(xflat, ((0, 0), (0, Mh_pad - Mh), (0, 0)))
        in_specs = [pl.BlockSpec((None, Mh_pad, Cin), lambda n: (n, 0, 0))]
        in_specs += const_specs
        args = [xflat, mask, w1, b1, w2, b2]
        scratch = [pltpu.VMEM((Mp, K1), jnp.bfloat16), hbuf_spec, col2_spec]
        bytes_accessed = N * Mh_pad * Cin * 2 + N * Mp * P * 2 + wb_bytes

        if has_skip_conv:
            wA = params["skip"]["w1_raw"][:, :, 0, 0].T              # (Cin, Cin)
            wB = params["skip"]["w2_raw"][:, :, 0, 0].T
            z = jnp.zeros((Cin, Cin), jnp.float32)
            wskip = jnp.stack([jnp.concatenate([wA, z], axis=1),
                               jnp.concatenate([z, wB], axis=1)],
                              axis=0).astype(jnp.bfloat16)           # (2, Cin, P)
            in_specs.append(pl.BlockSpec((2, Cin, P), lambda n: (0, 0, 0)))
            args.append(wskip)
            kern = partial(_kernel_s1_skipconv, Cin, Ho, Wo, P)
            flops = base_flops + 4 * N * Mp * Cin * P
            bytes_accessed += wskip.size * 2
        else:
            kern = partial(_kernel_s1_identity, Cin, Ho, Wo, P)
            flops = base_flops
    else:
        assert has_skip_conv, "stride != 1 requires the SkippingBranch"
        # conv1 input via wrapper-side im2col (relu commutes with zero padding),
        # padded with 2 junk output columns so rows match the kernel layout.
        rx = jnp.maximum(x, 0.0).astype(jnp.bfloat16)
        patches, Ho_, Wo_ = _im2col(rx, 3, stride, 1)
        assert (Ho_, Wo_) == (Ho, Wo)
        patches = jnp.pad(patches, ((0, 0), (0, 0), (0, 2), (0, 0)))
        patches = patches.reshape(N, Mp, K1)
        # SkippingBranch input: AvgPool2d(k=1, stride=s) == strided subsampling.
        xb = x.astype(jnp.bfloat16)
        sub1 = xb[:, ::stride, ::stride, :]
        shift = jnp.pad(xb[:, 1:, 1:, :], ((0, 0), (0, 1), (0, 1), (0, 0)))
        sub2 = shift[:, ::stride, ::stride, :]
        skip_in = jnp.concatenate([sub1, sub2], axis=-1)             # (N,Ho,Wo,2Cin)
        skip_in = jnp.pad(skip_in, ((0, 0), (0, 0), (0, 2), (0, 0)))
        skip_in = skip_in.reshape(N, Mp, P)
        # block-diagonal 1x1-conv weight: [sub1|sub2] @ wskip == cat([y1, y2]).
        wA = params["skip"]["w1_raw"][:, :, 0, 0].T
        wB = params["skip"]["w2_raw"][:, :, 0, 0].T
        z = jnp.zeros((Cin, Cin), jnp.float32)
        wskip = jnp.concatenate(
            [jnp.concatenate([wA, z], axis=1),
             jnp.concatenate([z, wB], axis=1)], axis=0).astype(jnp.bfloat16)

        in_specs = [pl.BlockSpec((None, Mp, K1), lambda n: (n, 0, 0)),
                    pl.BlockSpec((None, Mp, P), lambda n: (n, 0, 0))]
        in_specs += const_specs
        in_specs.append(pl.BlockSpec((P, P), lambda n: (0, 0)))
        args = [patches, skip_in, mask, w1, b1, w2, b2, wskip]
        scratch = [hbuf_spec, col2_spec]
        kern = partial(_kernel_strided_skipconv, Ho, Wo, P)
        flops = base_flops + 2 * N * Mp * P * P
        bytes_accessed = (N * Mp * K1 * 2 + 2 * N * Mp * P * 2
                          + wb_bytes + wskip.size * 2)

    out = pl.pallas_call(
        kern,
        out_shape=out_sds,
        grid=(N,),
        in_specs=in_specs,
        out_specs=out_spec,
        scratch_shapes=scratch,
        compiler_params=cparams,
        cost_estimate=pl.CostEstimate(flops=flops, transcendentals=0,
                                      bytes_accessed=bytes_accessed),
    )(*args)

    # Drop the 2 junk columns (fuses with whatever consumes the NHWC output).
    return out.reshape(N, Ho, Wp, P)[:, :, :Wo, :]                   # NHWC bf16


@partial(jax.jit, static_argnums=(2,))
def shake_block_forward(x_nchw, params, stride):
    # NCHW adapter for parity with the PyTorch module.  When stacking blocks,
    # call shake_block_forward_nhwc directly and stay NHWC/bf16 between blocks.
    x = jnp.transpose(x_nchw, (0, 2, 3, 1))
    out = shake_block_forward_nhwc(x, params, stride)
    return jnp.transpose(out, (0, 3, 1, 2)).astype(jnp.float32)


# --------------------------------------------------------------------------
# Deterministic parameter init (PyTorch weight layouts; BN folded for eval).
# --------------------------------------------------------------------------
def init_shake_block_params(key, inplanes, planes):
    ks = jax.random.split(key, 4)

    def conv_w(k, cout, cin, ksz):
        return 0.1 * jax.random.normal(k, (cout, cin, ksz, ksz), jnp.float32)

    def bn_fold(k, c):
        k1, k2, k3, k4 = jax.random.split(k, 4)
        gamma = 1.0 + 0.1 * jax.random.normal(k1, (c,), jnp.float32)
        beta = 0.1 * jax.random.normal(k2, (c,), jnp.float32)
        mean = 0.1 * jax.random.normal(k3, (c,), jnp.float32)
        var = 1.0 + 0.1 * jnp.abs(jax.random.normal(k4, (c,), jnp.float32))
        scale = gamma * jax.lax.rsqrt(var + BN_EPS)
        bias = beta - mean * scale
        return scale.reshape(1, c), bias.reshape(1, c)

    def residual(k):
        k1, k2, k3, k4 = jax.random.split(k, 4)
        s1, b1 = bn_fold(k2, planes)
        s2, b2 = bn_fold(k4, planes)
        return dict(w1=conv_w(k1, planes, inplanes, 3), s1=s1, b1=b1,
                    w2=conv_w(k3, planes, planes, 3), s2=s2, b2=b2)

    params = dict(rb1=residual(ks[0]), rb2=residual(ks[1]))
    if inplanes != planes:
        params["skip"] = dict(w1_raw=conv_w(ks[2], inplanes, inplanes, 1),
                              w2_raw=conv_w(ks[3], inplanes, inplanes, 1))
    return params


# --------------------------------------------------------------------------
# Pure-JAX reference (NCHW, matching PyTorch eval semantics) for validation.
# --------------------------------------------------------------------------
def _ref_conv(x, w, stride, pad):
    return jax.lax.conv_general_dilated(
        x, w, (stride, stride), [(pad, pad), (pad, pad)],
        dimension_numbers=("NCHW", "OIHW", "NCHW"),
        precision=jax.lax.Precision.HIGHEST)


def _ref_bn(x, scale, bias):
    return x * scale.reshape(1, -1, 1, 1) + bias.reshape(1, -1, 1, 1)


def _ref_residual(x, p, stride):
    h = _ref_bn(_ref_conv(jnp.maximum(x, 0.0), p["w1"], stride, 1), p["s1"], p["b1"])
    return _ref_bn(_ref_conv(jnp.maximum(h, 0.0), p["w2"], 1, 1), p["s2"], p["b2"])


def ref_shake_block(x, params, stride):
    o1 = _ref_residual(x, params["rb1"], stride)
    o2 = _ref_residual(x, params["rb2"], stride)
    out = 0.5 * o1 + 0.5 * o2
    if "skip" in params:
        sub1 = x[:, :, ::stride, ::stride]
        y1 = _ref_conv(sub1, params["skip"]["w1_raw"], 1, 0)
        shift = jnp.pad(x[:, :, 1:, 1:], ((0, 0), (0, 0), (0, 1), (0, 1)))
        sub2 = shift[:, :, ::stride, ::stride]
        y2 = _ref_conv(sub2, params["skip"]["w2_raw"], 1, 0)
        skip = jnp.concatenate([y1, y2], axis=1)
    else:
        skip = x
    return out + skip


# --------------------------------------------------------------------------
if __name__ == "__main__":
    key = jax.random.PRNGKey(0)
    kx1, kp1, kx2, kp2, kx3, kp3 = jax.random.split(key, 6)

    # 1) Downsampling ShakeBlock (inplanes != planes, stride 2 -> SkippingBranch).
    x = jax.random.normal(kx1, (2, 4, 16, 16), jnp.float32)           # NCHW
    params = init_shake_block_params(kp1, 4, 8)
    out = jax.block_until_ready(shake_block_forward(x, params, 2))
    ref = ref_shake_block(x, params, 2)
    assert out.shape == ref.shape == (2, 8, 8, 8), (out.shape, ref.shape)
    np.testing.assert_allclose(np.asarray(out), np.asarray(ref),
                               rtol=2e-2, atol=2e-2)

    # 2) Identity-skip ShakeBlock (inplanes == planes, stride 1).
    x2 = jax.random.normal(kx2, (2, 8, 8, 8), jnp.float32)
    params2 = init_shake_block_params(kp2, 8, 8)
    out2 = jax.block_until_ready(shake_block_forward(x2, params2, 1))
    ref2 = ref_shake_block(x2, params2, 1)
    assert out2.shape == ref2.shape == (2, 8, 8, 8), (out2.shape, ref2.shape)
    np.testing.assert_allclose(np.asarray(out2), np.asarray(ref2),
                               rtol=2e-2, atol=2e-2)

    # 3) Channel-increase ShakeBlock at stride 1 (SkippingBranch, avg_pool==id).
    x3 = jax.random.normal(kx3, (2, 4, 16, 16), jnp.float32)
    params3 = init_shake_block_params(kp3, 4, 8)
    out3 = jax.block_until_ready(shake_block_forward(x3, params3, 1))
    ref3 = ref_shake_block(x3, params3, 1)
    assert out3.shape == ref3.shape == (2, 8, 16, 16), (out3.shape, ref3.shape)
    np.testing.assert_allclose(np.asarray(out3), np.asarray(ref3),
                               rtol=2e-2, atol=2e-2)

    print("KERNEL_OK")
</pallas_src>

<mosaic_0001>
module attributes {stable_mosaic.version = 11 : i64} {
  func.func @_kernel_strided_skipconv(%arg0: i32, %arg1: memref<1x80x36xbf16, #tpu.memory_space<vmem>>, %arg2: memref<1x80x8xbf16, #tpu.memory_space<vmem>>, %arg3: memref<80x1xf32, #tpu.memory_space<vmem>>, %arg4: memref<36x16xbf16, #tpu.memory_space<vmem>>, %arg5: memref<1x16xf32, #tpu.memory_space<vmem>>, %arg6: memref<144x8xbf16, #tpu.memory_space<vmem>>, %arg7: memref<1x8xf32, #tpu.memory_space<vmem>>, %arg8: memref<8x8xbf16, #tpu.memory_space<vmem>>, %arg9: memref<1x80x8xbf16, #tpu.memory_space<vmem>>, %arg10: memref<108x16xbf16, #tpu.memory_space<vmem>>, %arg11: memref<80x144xbf16, #tpu.memory_space<vmem>>) attributes {dimension_semantics = [#tpu.dimension_semantics<parallel>], iteration_bounds = array<i64: 2>, scalar_prefetch = 0 : i64, scratch_operands = 2 : i64, tpu.core_type = #tpu.core_type<tc>, window_params = [{transform_indices = @transform_0, window_bounds = array<i64: 1, 80, 36>}, {transform_indices = @transform_1, window_bounds = array<i64: 1, 80, 8>}, {pipeline_mode = #tpu.pipeline_mode<synchronous>, transform_indices = @transform_2, window_bounds = array<i64: 80, 1>}, {pipeline_mode = #tpu.pipeline_mode<synchronous>, transform_indices = @transform_3, window_bounds = array<i64: 36, 16>}, {pipeline_mode = #tpu.pipeline_mode<synchronous>, transform_indices = @transform_4, window_bounds = array<i64: 1, 16>}, {pipeline_mode = #tpu.pipeline_mode<synchronous>, transform_indices = @transform_5, window_bounds = array<i64: 144, 8>}, {pipeline_mode = #tpu.pipeline_mode<synchronous>, transform_indices = @transform_6, window_bounds = array<i64: 1, 8>}, {pipeline_mode = #tpu.pipeline_mode<synchronous>, transform_indices = @transform_7, window_bounds = array<i64: 8, 8>}, {transform_indices = @transform_8, window_bounds = array<i64: 1, 80, 8>}]} {
    %c0 = arith.constant 0 : index
    %c0_0 = arith.constant 0 : index
    %c0_1 = arith.constant 0 : index
    %0 = vector.load %arg1[%c0, %c0_0, %c0_1] : memref<1x80x36xbf16, #tpu.memory_space<vmem>>, vector<1x80x36xbf16>
    %1 = vector.shape_cast %0 : vector<1x80x36xbf16> to vector<80x36xbf16>
    %c0_2 = arith.constant 0 : index
    %c0_3 = arith.constant 0 : index
    %2 = vector.load %arg4[%c0_2, %c0_3] : memref<36x16xbf16, #tpu.memory_space<vmem>>, vector<36x16xbf16>
    %cst = arith.constant dense<0.000000e+00> : vector<80x16xf32>
    %3 = tpu.matmul %1, %2, %cst {dimension_numbers = #tpu.dot_dimension_numbers<[1], [0], [0], [1], [0, 0, 1, 1], [], []>} : vector<80x36xbf16>, vector<36x16xbf16>, vector<80x16xf32> -> vector<80x16xf32>
    %c0_4 = arith.constant 0 : index
    %c0_5 = arith.constant 0 : index
    %4 = vector.load %arg5[%c0_4, %c0_5] : memref<1x16xf32, #tpu.memory_space<vmem>>, vector<1x16xf32>
    %5 = vector.broadcast %4 : vector<1x16xf32> to vector<80x16xf32>
    %6 = arith.addf %3, %5 : vector<80x16xf32>
    %cst_6 = arith.constant 0.000000e+00 : f32
    %7 = vector.broadcast %cst_6 : f32 to vector<80x16xf32>
    %8 = arith.maximumf %6, %7 : vector<80x16xf32>
    %c0_7 = arith.constant 0 : index
    %c0_8 = arith.constant 0 : index
    %c0_9 = arith.constant 0 : index
    %9 = vector.load %arg2[%c0_7, %c0_8, %c0_9] : memref<1x80x8xbf16, #tpu.memory_space<vmem>>, vector<1x80x8xbf16>
    %10 = vector.shape_cast %9 : vector<1x80x8xbf16> to vector<80x8xbf16>
    %c0_10 = arith.constant 0 : index
    %c0_11 = arith.constant 0 : index
    %11 = vector.load %arg8[%c0_10, %c0_11] : memref<8x8xbf16, #tpu.memory_space<vmem>>, vector<8x8xbf16>
    %cst_12 = arith.constant dense<0.000000e+00> : vector<80x8xf32>
    %12 = tpu.matmul %10, %11, %cst_12 {dimension_numbers = #tpu.dot_dimension_numbers<[1], [0], [0], [1], [0, 0, 1, 1], [], []>} : vector<80x8xbf16>, vector<8x8xbf16>, vector<80x8xf32> -> vector<80x8xf32>
    %c0_13 = arith.constant 0 : index
    %c0_14 = arith.constant 0 : index
    %13 = vector.load %arg3[%c0_13, %c0_14] : memref<80x1xf32, #tpu.memory_space<vmem>>, vector<80x1xf32>
    %cst_15 = arith.constant 0.000000e+00 : bf16
    %14 = vector.broadcast %cst_15 : bf16 to vector<11x16xbf16>
    %c0_16 = arith.constant 0 : index
    %c0_17 = arith.constant 0 : index
    %15 = vector.load %arg10[%c0_16, %c0_17] : memref<108x16xbf16, #tpu.memory_space<vmem>>, vector<11x16xbf16>
    tpu.vector_store %arg10[%c0_16, %c0_17], %14 {strides = array<i32>} : memref<108x16xbf16, #tpu.memory_space<vmem>>, vector<11x16xbf16>,
    %cst_18 = arith.constant 0.000000e+00 : bf16
    %16 = vector.broadcast %cst_18 : bf16 to vector<17x16xbf16>
    %c91 = arith.constant 91 : index
    %c0_19 = arith.constant 0 : index
    %17 = vector.load %arg10[%c91, %c0_19] : memref<108x16xbf16, #tpu.memory_space<vmem>>, vector<17x16xbf16>
    tpu.vector_store %arg10[%c91, %c0_19], %16 {strides = array<i32>} : memref<108x16xbf16, #tpu.memory_space<vmem>>, vector<17x16xbf16>,
    %18 = vector.broadcast %13 : vector<80x1xf32> to vector<80x16xf32>
    %19 = arith.mulf %8, %18 : vector<80x16xf32>
    %20 = arith.truncf %19 : vector<80x16xf32> to vector<80x16xbf16>
    %c11 = arith.constant 11 : index
    %c0_20 = arith.constant 0 : index
    %21 = vector.load %arg10[%c11, %c0_20] : memref<108x16xbf16, #tpu.memory_space<vmem>>, vector<80x16xbf16>
    tpu.vector_store %arg10[%c11, %c0_20], %20 {strides = array<i32>} : memref<108x16xbf16, #tpu.memory_space<vmem>>, vector<80x16xbf16>,
    %c0_21 = arith.constant 0 : index
    %c0_22 = arith.constant 0 : index
    %22 = vector.load %arg10[%c0_21, %c0_22] : memref<108x16xbf16, #tpu.memory_space<vmem>>, vector<80x16xbf16>
    %c0_23 = arith.constant 0 : index
    %c0_24 = arith.constant 0 : index
    %23 = vector.load %arg11[%c0_23, %c0_24] : memref<80x144xbf16, #tpu.memory_space<vmem>>, vector<80x16xbf16>
    tpu.vector_store %arg11[%c0_23, %c0_24], %22 {strides = array<i32>} : memref<80x144xbf16, #tpu.memory_space<vmem>>, vector<80x16xbf16>,
    %c1 = arith.constant 1 : index
    %c0_25 = arith.constant 0 : index
    %24 = vector.load %arg10[%c1, %c0_25] : memref<108x16xbf16, #tpu.memory_space<vmem>>, vector<80x16xbf16>
    %c0_26 = arith.constant 0 : index
    %c16 = arith.constant 16 : index
    %25 = vector.load %arg11[%c0_26, %c16] : memref<80x144xbf16, #tpu.memory_space<vmem>>, vector<80x16xbf16>
    tpu.vector_store %arg11[%c0_26, %c16], %24 {strides = array<i32>} : memref<80x144xbf16, #tpu.memory_space<vmem>>, vector<80x16xbf16>,
    %c2 = arith.constant 2 : index
    %c0_27 = arith.constant 0 : index
    %26 = vector.load %arg10[%c2, %c0_27] : memref<108x16xbf16, #tpu.memory_space<vmem>>, vector<80x16xbf16>
    %c0_28 = arith.constant 0 : index
    %c32 = arith.constant 32 : index
    %27 = vector.load %arg11[%c0_28, %c32] : memref<80x144xbf16, #tpu.memory_space<vmem>>, vector<80x16xbf16>
    tpu.vector_store %arg11[%c0_28, %c32], %26 {strides = array<i32>} : memref<80x144xbf16, #tpu.memory_space<vmem>>, vector<80x16xbf16>,
    %c10 = arith.constant 10 : index
    %c0_29 = arith.constant 0 : index
    %28 = vector.load %arg10[%c10, %c0_29] : memref<108x16xbf16, #tpu.memory_space<vmem>>, vector<80x16xbf16>
    %c0_30 = arith.constant 0 : index
    %c48 = arith.constant 48 : index
    %29 = vector.load %arg11[%c0_30, %c48] : memref<80x144xbf16, #tpu.memory_space<vmem>>, vector<80x16xbf16>
    tpu.vector_store %arg11[%c0_30, %c48], %28 {strides = array<i32>} : memref<80x144xbf16, #tpu.memory_space<vmem>>, vector<80x16xbf16>,
    %c11_31 = arith.constant 11 : index
    %c0_32 = arith.constant 0 : index
    %30 = vector.load %arg10[%c11_31, %c0_32] : memref<108x16xbf16, #tpu.memory_space<vmem>>, vector<80x16xbf16>
    %c0_33 = arith.constant 0 : index
    %c64 = arith.constant 64 : index
    %31 = vector.load %arg11[%c0_33, %c64] : memref<80x144xbf16, #tpu.memory_space<vmem>>, vector<80x16xbf16>
    tpu.vector_store %arg11[%c0_33, %c64], %30 {strides = array<i32>} : memref<80x144xbf16, #tpu.memory_space<vmem>>, vector<80x16xbf16>,
    %c12 = arith.constant 12 : index
    %c0_34 = arith.constant 0 : index
    %32 = vector.load %arg10[%c12, %c0_34] : memref<108x16xbf16, #tpu.memory_space<vmem>>, vector<80x16xbf16>
    %c0_35 = arith.constant 0 : index
    %c80 = arith.constant 80 : index
    %33 = vector.load %arg11[%c0_35, %c80] : memref<80x144xbf16, #tpu.memory_space<vmem>>, vector<80x16xbf16>
    tpu.vector_store %arg11[%c0_35, %c80], %32 {strides = array<i32>} : memref<80x144xbf16, #tpu.memory_space<vmem>>, vector<80x16xbf16>,
    %c20 = arith.constant 20 : index
    %c0_36 = arith.constant 0 : index
    %34 = vector.load %arg10[%c20, %c0_36] : memref<108x16xbf16, #tpu.memory_space<vmem>>, vector<80x16xbf16>
    %c0_37 = arith.constant 0 : index
    %c96 = arith.constant 96 : index
    %35 = vector.load %arg11[%c0_37, %c96] : memref<80x144xbf16, #tpu.memory_space<vmem>>, vector<80x16xbf16>
    tpu.vector_store %arg11[%c0_37, %c96], %34 {strides = array<i32>} : memref<80x144xbf16, #tpu.memory_space<vmem>>, vector<80x16xbf16>,
    %c21 = arith.constant 21 : index
    %c0_38 = arith.constant 0 : index
    %36 = vector.load %arg10[%c21, %c0_38] : memref<108x16xbf16, #tpu.memory_space<vmem>>, vector<80x16xbf16>
    %c0_39 = arith.constant 0 : index
    %c112 = arith.constant 112 : index
    %37 = vector.load %arg11[%c0_39, %c112] : memref<80x144xbf16, #tpu.memory_space<vmem>>, vector<80x16xbf16>
    tpu.vector_store %arg11[%c0_39, %c112], %36 {strides = array<i32>} : memref<80x144xbf16, #tpu.memory_space<vmem>>, vector<80x16xbf16>,
    %c22 = arith.constant 22 : index
    %c0_40 = arith.constant 0 : index
    %38 = vector.load %arg10[%c22, %c0_40] : memref<108x16xbf16, #tpu.memory_space<vmem>>, vector<80x16xbf16>
    %c0_41 = arith.constant 0 : index
    %c128 = arith.constant 128 : index
    %39 = vector.load %arg11[%c0_41, %c128] : memref<80x144xbf16, #tpu.memory_space<vmem>>, vector<80x16xbf16>
    tpu.vector_store %arg11[%c0_41, %c128], %38 {strides = array<i32>} : memref<80x144xbf16, #tpu.memory_space<vmem>>, vector<80x16xbf16>,
    %c0_42 = arith.constant 0 : index
    %c0_43 = arith.constant 0 : index
    %40 = vector.load %arg11[%c0_42, %c0_43] : memref<80x144xbf16, #tpu.memory_space<vmem>>, vector<80x144xbf16>
    %c0_44 = arith.constant 0 : index
    %c0_45 = arith.constant 0 : index
    %41 = vector.load %arg6[%c0_44, %c0_45] : memref<144x8xbf16, #tpu.memory_space<vmem>>, vector<144x8xbf16>
    %cst_46 = arith.constant dense<0.000000e+00> : vector<80x8xf32>
    %42 = tpu.matmul %40, %41, %cst_46 {dimension_numbers = #tpu.dot_dimension_numbers<[1], [0], [0], [1], [0, 0, 1, 1], [], []>} : vector<80x144xbf16>, vector<144x8xbf16>, vector<80x8xf32> -> vector<80x8xf32>
    %c0_47 = arith.constant 0 : index
    %c0_48 = arith.constant 0 : index
    %43 = vector.load %arg7[%c0_47, %c0_48] : memref<1x8xf32, #tpu.memory_space<vmem>>, vector<1x8xf32>
    %44 = vector.broadcast %43 : vector<1x8xf32> to vector<80x8xf32>
    %45 = arith.addf %42, %44 : vector<80x8xf32>
    %46 = arith.addf %45, %12 : vector<80x8xf32>
    %47 = arith.truncf %46 : vector<80x8xf32> to vector<80x8xbf16>
    %c0_49 = arith.constant 0 : index
    %c0_50 = arith.constant 0 : index
    %c0_51 = arith.constant 0 : index
    %48 = vector.load %arg9[%c0_49, %c0_50, %c0_51] : memref<1x80x8xbf16, #tpu.memory_space<vmem>>, vector<1x80x8xbf16>
    %49 = vector.shape_cast %48 : vector<1x80x8xbf16> to vector<80x8xbf16>
    %50 = vector.shape_cast %47 : vector<80x8xbf16> to vector<1x80x8xbf16>
    tpu.vector_store %arg9[%c0_49, %c0_50, %c0_51], %50 {strides = array<i32>} : memref<1x80x8xbf16, #tpu.memory_space<vmem>>, vector<1x80x8xbf16>,
    return
  }
  func.func @transform_0(%arg0: i32) -> (i32, i32, i32) {
    %c0_i32 = arith.constant 0 : i32
    %c0_i32_0 = arith.constant 0 : i32
    %c0_i32_1 = arith.constant 0 : i32
    return %arg0, %c0_i32, %c0_i32_0 : i32, i32, i32
  }
  func.func @transform_1(%arg0: i32) -> (i32, i32, i32) {
    %c0_i32 = arith.constant 0 : i32
    %c0_i32_0 = arith.constant 0 : i32
    %c0_i32_1 = arith.constant 0 : i32
    return %arg0, %c0_i32, %c0_i32_0 : i32, i32, i32
  }
  func.func @transform_2(%arg0: i32) -> (i32, i32) {
    %c0_i32 = arith.constant 0 : i32
    %c0_i32_0 = arith.constant 0 : i32
    %c0_i32_1 = arith.constant 0 : i32
    return %c0_i32, %c0_i32_0 : i32, i32
  }
  func.func @transform_3(%arg0: i32) -> (i32, i32) {
    %c0_i32 = arith.constant 0 : i32
    %c0_i32_0 = arith.constant 0 : i32
    %c0_i32_1 = arith.constant 0 : i32
    return %c0_i32, %c0_i32_0 : i32, i32
  }
  func.func @transform_4(%arg0: i32) -> (i32, i32) {
    %c0_i32 = arith.constant 0 : i32
    %c0_i32_0 = arith.constant 0 : i32
    %c0_i32_1 = arith.constant 0 : i32
    return %c0_i32, %c0_i32_0 : i32, i32
  }
  func.func @transform_5(%arg0: i32) -> (i32, i32) {
    %c0_i32 = arith.constant 0 : i32
    %c0_i32_0 = arith.constant 0 : i32
    %c0_i32_1 = arith.constant 0 : i32
    return %c0_i32, %c0_i32_0 : i32, i32
  }
  func.func @transform_6(%arg0: i32) -> (i32, i32) {
    %c0_i32 = arith.constant 0 : i32
    %c0_i32_0 = arith.constant 0 : i32
    %c0_i32_1 = arith.constant 0 : i32
    return %c0_i32, %c0_i32_0 : i32, i32
  }
  func.func @transform_7(%arg0: i32) -> (i32, i32) {
    %c0_i32 = arith.constant 0 : i32
    %c0_i32_0 = arith.constant 0 : i32
    %c0_i32_1 = arith.constant 0 : i32
    return %c0_i32, %c0_i32_0 : i32, i32
  }
  func.func @transform_8(%arg0: i32) -> (i32, i32, i32) {
    %c0_i32 = arith.constant 0 : i32
    %c0_i32_0 = arith.constant 0 : i32
    %c0_i32_1 = arith.constant 0 : i32
    return %arg0, %c0_i32, %c0_i32_0 : i32, i32, i32
  }
}

</mosaic_0001>

<llo_original>
// kernel: shake_block_forward.1
$region0: #{shake_block_forward.1}
  #allocation0 [shape = 'u32[]', space=smem, size = 0x4, offset = 0x4, fixed_abs, tag = 'smem constant byte address 0x4 - core index']
  #allocation1 [shape = 'u32[144,128]{1,0:T(1,128)}', space=vmem, size = 0x12000, scoped, tag = 'internal scratch']
  #allocation2 [shape = 'bf16[108,16]{1,0:T(8,128)(2,1)}', space=vmem, size = 0x7000, scoped, tag = 'scratch operand']
  #allocation3 [shape = 'bf16[80,144]{1,0:T(16,128)(2,1)}', space=vmem, size = 0xa000, scoped, tag = 'scratch operand']
  %s0 = inlined_call_operand.vmem [shape: bf16[2,80,36], index: 0, kind: input, shape index: {}]
  %s1 = inlined_call_operand.vmem [shape: bf16[2,80,8], index: 1, kind: input, shape index: {}]
  %s2 = inlined_call_operand.vmem [shape: f32[80,1], index: 2, kind: input, shape index: {}]
  %s3 = inlined_call_operand.vmem [shape: bf16[36,16], index: 3, kind: input, shape index: {}]
  %s4 = inlined_call_operand.vmem [shape: f32[1,16], index: 4, kind: input, shape index: {}]
  %s5 = inlined_call_operand.vmem [shape: bf16[144,8], index: 5, kind: input, shape index: {}]
  %s6 = inlined_call_operand.vmem [shape: f32[1,8], index: 6, kind: input, shape index: {}]
  %s7 = inlined_call_operand.vmem [shape: bf16[8,8], index: 7, kind: input, shape index: {}]
  %s8 = inlined_call_operand.vmem [shape: bf16[2,80,8], index: 8, kind: output, shape index: {}]
  %s9 = sld [smem:[#allocation0]]
  $region65: #{shake_block_forward.1} parent=0
    _
  %s11 = ssub.s32 1, %s9
  %s12 = scalar_select 0, %s11, %s9
  loop: start=0, step=1, limit=4
  $region2: #{shake_block_forward.1} parent=0 // loop_pre_header
    _
  $region3: #{shake_block_forward.1} parent=0 // loop_header
    %s14 = sphi 0, %s18
    %p15 = scmp.ge.s32.totalorder %s14, 4
    %s24 = sphi 0, %s26
    %s27 = sphi 0, %s24
    %s28 = sphi 0, %s27
    %s44 = sphi 0, %s28
    %s50 = sphi 0, %s52
    %s53 = sphi 0, %s50
    %s54 = sphi 0, %s53
    %s70 = sphi 0, %s54
    %s74 = sphi 0, %s74
    %s76 = sphi 0, %s74
    %s77 = sphi 0, %s76
    %s91 = sphi 0, %s77
    %s95 = sphi 0, %s95
    %s97 = sphi 0, %s95
    %s98 = sphi 0, %s97
    %s112 = sphi 0, %s98
    %s116 = sphi 0, %s116
    %s118 = sphi 0, %s116
    %s119 = sphi 0, %s118
    %s133 = sphi 0, %s119
    %s137 = sphi 0, %s137
    %s139 = sphi 0, %s137
    %s140 = sphi 0, %s139
    %s154 = sphi 0, %s140
    %s158 = sphi 0, %s158
    %s160 = sphi 0, %s158
    %s161 = sphi 0, %s160
    %s175 = sphi 0, %s161
    %s179 = sphi 0, %s179
    %s181 = sphi 0, %s179
    %s182 = sphi 0, %s181
    %s196 = sphi 0, %s182
    %s202 = sphi 0, %s204
    %s205 = sphi 0, %s202
    %s206 = sphi 0, %s205
    %s222 = sphi 0, %s206
  $region4: #{shake_block_forward.1} parent=0 // loop_header_branch
    %17 = sbr.rel (%p15) target = $region8
  $region5: #{shake_block_forward.1} parent=0 // loop_body
    %s19 = ssub.s32 %s14, 1
    %s20 = ssub.s32 %s14, 2
    %s21 = sadd.s32 %s14, 1
    %s22 = ssub.s32 %s14, %s21
    %p23 = scmp.eq.s32.totalorder %s22, 0
    %s25 = sadd.s32 %s24, 1
    %s26 = scalar_select %p23, %s24, %s25
    %p29 = pneg %p23
    %p30 = scmp.eq.s32.totalorder %s14, 1
    %p31 = por %p29, %p30
    %p32 = scmp.ne.s32.totalorder %s24, %s27
    %p33 = scmp.eq.s32.totalorder %s14, 0
    %p34 = por %p32, %p33
    %p35 = scmp.ne.s32.totalorder %s24, %s27
    %p36 = scmp.eq.s32.totalorder %s19, 1
    %p37 = por %p35, %p36
    %p38 = scmp.ne.s32.totalorder %s27, %s28
    %p39 = scmp.eq.s32.totalorder %s19, 0
    %p40 = por %p38, %p39
    %p41 = scmp.ne.s32.totalorder %s27, %s28
    %p42 = scmp.eq.s32.totalorder %s20, 1
    %p43 = por %p41, %p42
    %p45 = scmp.ne.s32.totalorder %s28, %s44
    %p46 = scmp.eq.s32.totalorder %s20, 0
    %p47 = por %p45, %p46
    %s48 = ssub.s32 %s14, %s21
    %p49 = scmp.eq.s32.totalorder %s48, 0
    %s51 = sadd.s32 %s50, 1
    %s52 = scalar_select %p49, %s50, %s51
    %p55 = pneg %p49
    %p56 = scmp.eq.s32.totalorder %s14, 1
    %p57 = por %p55, %p56
    %p58 = scmp.ne.s32.totalorder %s50, %s53
    %p59 = scmp.eq.s32.totalorder %s14, 0
    %p60 = por %p58, %p59
    %p61 = scmp.ne.s32.totalorder %s50, %s53
    %p62 = scmp.eq.s32.totalorder %s19, 1
    %p63 = por %p61, %p62
    %p64 = scmp.ne.s32.totalorder %s53, %s54
    %p65 = scmp.eq.s32.totalorder %s19, 0
    %p66 = por %p64, %p65
    %p67 = scmp.ne.s32.totalorder %s53, %s54
    %p68 = scmp.eq.s32.totalorder %s20, 1
    %p69 = por %p67, %p68
    %p71 = scmp.ne.s32.totalorder %s54, %s70
    %p72 = scmp.eq.s32.totalorder %s20, 0
    %p73 = por %p71, %p72
    %s75 = sadd.s32 %s74, 1
    %p78 = scmp.eq.s32.totalorder %s14, 1
    %p79 = scmp.ne.s32.totalorder %s74, %s76
    %p80 = scmp.eq.s32.totalorder %s14, 0
    %p81 = por %p79, %p80
    %p82 = scmp.ne.s32.totalorder %s74, %s76
    %p83 = scmp.eq.s32.totalorder %s19, 1
    %p84 = por %p82, %p83
    %p85 = scmp.ne.s32.totalorder %s76, %s77
    %p86 = scmp.eq.s32.totalorder %s19, 0
    %p87 = por %p85, %p86
    %p88 = scmp.ne.s32.totalorder %s76, %s77
    %p89 = scmp.eq.s32.totalorder %s20, 1
    %p90 = por %p88, %p89
    %p92 = scmp.ne.s32.totalorder %s77, %s91
    %p93 = scmp.eq.s32.totalorder %s20, 0
    %p94 = por %p92, %p93
    %s96 = sadd.s32 %s95, 1
    %p99 = scmp.eq.s32.totalorder %s14, 1
    %p100 = scmp.ne.s32.totalorder %s95, %s97
    %p101 = scmp.eq.s32.totalorder %s14, 0
    %p102 = por %p100, %p101
    %p103 = scmp.ne.s32.totalorder %s95, %s97
    %p104 = scmp.eq.s32.totalorder %s19, 1
    %p105 = por %p103, %p104
    %p106 = scmp.ne.s32.totalorder %s97, %s98
    %p107 = scmp.eq.s32.totalorder %s19, 0
    %p108 = por %p106, %p107
    %p109 = scmp.ne.s32.totalorder %s97, %s98
    %p110 = scmp.eq.s32.totalorder %s20, 1
    %p111 = por %p109, %p110
    %p113 = scmp.ne.s32.totalorder %s98, %s112
    %p114 = scmp.eq.s32.totalorder %s20, 0
    %p115 = por %p113, %p114
    %s117 = sadd.s32 %s116, 1
    %p120 = scmp.eq.s32.totalorder %s14, 1
    %p121 = scmp.ne.s32.totalorder %s116, %s118
    %p122 = scmp.eq.s32.totalorder %s14, 0
    %p123 = por %p121, %p122
    %p124 = scmp.ne.s32.totalorder %s116, %s118
    %p125 = scmp.eq.s32.totalorder %s19, 1
    %p126 = por %p124, %p125
    %p127 = scmp.ne.s32.totalorder %s118, %s119
    %p128 = scmp.eq.s32.totalorder %s19, 0
    %p129 = por %p127, %p128
    %p130 = scmp.ne.s32.totalorder %s118, %s119
    %p131 = scmp.eq.s32.totalorder %s20, 1
    %p132 = por %p130, %p131
    %p134 = scmp.ne.s32.totalorder %s119, %s133
    %p135 = scmp.eq.s32.totalorder %s20, 0
    %p136 = por %p134, %p135
    %s138 = sadd.s32 %s137, 1
    %p141 = scmp.eq.s32.totalorder %s14, 1
    %p142 = scmp.ne.s32.totalorder %s137, %s139
    %p143 = scmp.eq.s32.totalorder %s14, 0
    %p144 = por %p142, %p143
    %p145 = scmp.ne.s32.totalorder %s137, %s139
    %p146 = scmp.eq.s32.totalorder %s19, 1
    %p147 = por %p145, %p146
    %p148 = scmp.ne.s32.totalorder %s139, %s140
    %p149 = scmp.eq.s32.totalorder %s19, 0
    %p150 = por %p148, %p149
    %p151 = scmp.ne.s32.totalorder %s139, %s140
    %p152 = scmp.eq.s32.totalorder %s20, 1
    %p153 = por %p151, %p152
    %p155 = scmp.ne.s32.totalorder %s140, %s154
    %p156 = scmp.eq.s32.totalorder %s20, 0
    %p157 = por %p155, %p156
    %s159 = sadd.s32 %s158, 1
    %p162 = scmp.eq.s32.totalorder %s14, 1
    %p163 = scmp.ne.s32.totalorder %s158, %s160
    %p164 = scmp.eq.s32.totalorder %s14, 0
    %p165 = por %p163, %p164
    %p166 = scmp.ne.s32.totalorder %s158, %s160
    %p167 = scmp.eq.s32.totalorder %s19, 1
    %p168 = por %p166, %p167
    %p169 = scmp.ne.s32.totalorder %s160, %s161
    %p170 = scmp.eq.s32.totalorder %s19, 0
    %p171 = por %p169, %p170
    %p172 = scmp.ne.s32.totalorder %s160, %s161
    %p173 = scmp.eq.s32.totalorder %s20, 1
    %p174 = por %p172, %p173
    %p176 = scmp.ne.s32.totalorder %s161, %s175
    %p177 = scmp.eq.s32.totalorder %s20, 0
    %p178 = por %p176, %p177
    %s180 = sadd.s32 %s179, 1
    %p183 = scmp.eq.s32.totalorder %s14, 1
    %p184 = scmp.ne.s32.totalorder %s179, %s181
    %p185 = scmp.eq.s32.totalorder %s14, 0
    %p186 = por %p184, %p185
    %p187 = scmp.ne.s32.totalorder %s179, %s181
    %p188 = scmp.eq.s32.totalorder %s19, 1
    %p189 = por %p187, %p188
    %p190 = scmp.ne.s32.totalorder %s181, %s182
    %p191 = scmp.eq.s32.totalorder %s19, 0
    %p192 = por %p190, %p191
    %p193 = scmp.ne.s32.totalorder %s181, %s182
    %p194 = scmp.eq.s32.totalorder %s20, 1
    %p195 = por %p193, %p194
    %p197 = scmp.ne.s32.totalorder %s182, %s196
    %p198 = scmp.eq.s32.totalorder %s20, 0
    %p199 = por %p197, %p198
    %s200 = ssub.s32 %s14, %s21
    %p201 = scmp.eq.s32.totalorder %s200, 0
    %s203 = sadd.s32 %s202, 1
    %s204 = scalar_select %p201, %s202, %s203
    %p207 = pneg %p201
    %p208 = scmp.eq.s32.totalorder %s14, 1
    %p209 = por %p207, %p208
    %p210 = scmp.ne.s32.totalorder %s202, %s205
    %p211 = scmp.eq.s32.totalorder %s14, 0
    %p212 = por %p210, %p211
    %p213 = scmp.ne.s32.totalorder %s202, %s205
    %p214 = scmp.eq.s32.totalorder %s19, 1
    %p215 = por %p213, %p214
    %p216 = scmp.ne.s32.totalorder %s205, %s206
    %p217 = scmp.eq.s32.totalorder %s19, 0
    %p218 = por %p216, %p217
    %p219 = scmp.ne.s32.totalorder %s205, %s206
    %p220 = scmp.eq.s32.totalorder %s20, 1
    %p221 = por %p219, %p220
    %p223 = scmp.ne.s32.totalorder %s206, %s222
    %p224 = scmp.eq.s32.totalorder %s20, 0
    %p225 = por %p223, %p224
    %p226 = scmp.le.s32.totalorder 1, %s14
    %p227 = scmp.lt.s32.totalorder %s14, 3
    %p228 = pnand %p226, %p227
    %p229 = pneg %p228
    // Predicated region
    $region9: #{shake_block_forward.1} parent=5 // pred_check
      _
    $region10: #{shake_block_forward.1} parent=5 // pred_check_branch
      %231 = sbr.rel (%p228) target = $region12
    $region11: #{shake_block_forward.1} parent=5 // pred_region
      %s232 = ssub.s32 %s14, 1
      // Predicated region
      $region13: #{shake_block_forward.1} parent=11 // pred_check
        %p233 = pneg %p87
      $region14: #{shake_block_forward.1} parent=11 // pred_check_branch
        %235 = sbr.rel (%p233) target = $region16
      $region15: #{shake_block_forward.1} parent=11 // pred_region
        _
      $region16: #{shake_block_forward.1} parent=11 // pred_fallthru
        _
      // Predicated region
      $region17: #{shake_block_forward.1} parent=11 // pred_check
        %p236 = pneg %p108
      $region18: #{shake_block_forward.1} parent=11 // pred_check_branch
        %238 = sbr.rel (%p236) target = $region20
      $region19: #{shake_block_forward.1} parent=11 // pred_region
        _
      $region20: #{shake_block_forward.1} parent=11 // pred_fallthru
        _
      // Predicated region
      $region21: #{shake_block_forward.1} parent=11 // pred_check
        %p239 = pneg %p129
      $region22: #{shake_block_forward.1} parent=11 // pred_check_branch
        %241 = sbr.rel (%p239) target = $region24
      $region23: #{shake_block_forward.1} parent=11 // pred_region
        _
      $region24: #{shake_block_forward.1} parent=11 // pred_fallthru
        _
      // Predicated region
      $region25: #{shake_block_forward.1} parent=11 // pred_check
        %p242 = pneg %p150
      $region26: #{shake_block_forward.1} parent=11 // pred_check_branch
        %244 = sbr.rel (%p242) target = $region28
      $region27: #{shake_block_forward.1} parent=11 // pred_region
        _
      $region28: #{shake_block_forward.1} parent=11 // pred_fallthru
        _
      // Predicated region
      $region29: #{shake_block_forward.1} parent=11 // pred_check
        %p245 = pneg %p171
      $region30: #{shake_block_forward.1} parent=11 // pred_check_branch
        %247 = sbr.rel (%p245) target = $region32
      $region31: #{shake_block_forward.1} parent=11 // pred_region
        _
      $region32: #{shake_block_forward.1} parent=11 // pred_fallthru
        _
      // Predicated region
      $region33: #{shake_block_forward.1} parent=11 // pred_check
        %p248 = pneg %p192
      $region34: #{shake_block_forward.1} parent=11 // pred_check_branch
        %250 = sbr.rel (%p248) target = $region36
      $region35: #{shake_block_forward.1} parent=11 // pred_region
        _
      $region36: #{shake_block_forward.1} parent=11 // pred_fallthru
        _
    $region12: #{shake_block_forward.1} parent=5 // pred_fallthru
      _
    %p251 = scmp.lt.s32.totalorder %s14, 2
    // Predicated region
    $region37: #{shake_block_forward.1} parent=5 // pred_check
      %p252 = pneg %p251
    $region38: #{shake_block_forward.1} parent=5 // pred_check_branch
      %254 = sbr.rel (%p252) target = $region40
    $region39: #{shake_block_forward.1} parent=5 // pred_region
      // Predicated region
      $region41: #{shake_block_forward.1} parent=39 // pred_check
        %p255 = pneg %p34
      $region42: #{shake_block_forward.1} parent=39 // pred_check_branch
        %257 = sbr.rel (%p255) target = $region44
      $region43: #{shake_block_forward.1} parent=39 // pred_region
        %p258 = scmp.lt.s32.totalorder %s14, 1
        %s259 = scalar_select %p258, %s14, 1
        %s260 = smul.addr %s259, 10
        %s261 = smul.addr %s260, 4
        %s262 = scalar_lea.vmem %s0, %s261
      $region44: #{shake_block_forward.1} parent=39 // pred_fallthru
        _
      // Predicated region
      $region45: #{shake_block_forward.1} parent=39 // pred_check
        %p263 = pneg %p60
      $region46: #{shake_block_forward.1} parent=39 // pred_check_branch
        %265 = sbr.rel (%p263) target = $region48
      $region47: #{shake_block_forward.1} parent=39 // pred_region
        %p266 = scmp.lt.s32.totalorder %s14, 1
        %s267 = scalar_select %p266, %s14, 1
        %s268 = smul.addr %s267, 10
        %s269 = smul.addr %s268, 4
        %s270 = scalar_lea.vmem %s1, %s269
      $region48: #{shake_block_forward.1} parent=39 // pred_fallthru
        _
    $region40: #{shake_block_forward.1} parent=5 // pred_fallthru
      _
    %p271 = scmp.le.s32.totalorder 1, %s14
    %p272 = scmp.lt.s32.totalorder %s14, 3
    %p273 = pnand %p271, %p272
    %p274 = pneg %p273
    // Predicated region
    $region49: #{shake_block_forward.1} parent=5 // pred_check
      _
    $region50: #{shake_block_forward.1} parent=5 // pred_check_branch
      %276 = sbr.rel (%p273) target = $region52
    $region51: #{shake_block_forward.1} parent=5 // pred_region
      %s277 = ssub.s32 %s14, 1
      %p278 = scmp.lt.s32.totalorder %s19, 1
      %s279 = scalar_select %p278, %s19, 1
      %s280 = smul.addr %s279, 10
      %s281 = smul.addr %s280, 4
      %s282 = scalar_lea.vmem %s0, %s281
      %p283 = pneg %p40
      %p284 = pneg %p37
      %p285 = scmp.lt.s32.totalorder %s19, 1
      %s286 = scalar_select %p285, %s19, 1
      %s287 = smul.addr %s286, 10
      %s288 = smul.addr %s287, 4
      %s289 = scalar_lea.vmem %s1, %s288
      %p290 = pneg %p66
      %p291 = pneg %p63
      %p292 = pneg %p87
      %p293 = pneg %p84
      %p294 = pneg %p108
      %p295 = pneg %p105
      %p296 = pneg %p129
      %p297 = pneg %p126
      %p298 = pneg %p150
      %p299 = pneg %p147
      %p300 = pneg %p171
      %p301 = pneg %p168
      %p302 = pneg %p192
      %p303 = pneg %p189
      %p304 = pneg %p218
      %p305 = pneg %p215
      %p306 = scmp.lt.s32.totalorder %s19, 1
      %s307 = scalar_select %p306, %s19, 1
      %s308 = smul.addr %s307, 10
      %s309 = smul.addr %s308, 4
      %s310 = scalar_lea.vmem %s8, %s309
      %p311 = scmp.lt.s32.totalorder %s19, 1
      %s312 = scalar_select %p311, %s19, 1
      %s313 = smul.addr %s312, 10
      %s314 = smul.addr %s313, 4
      %s315 = scalar_lea.vmem %s0, %s314
      %p316 = scmp.lt.s32.totalorder %s19, 1
      %s317 = scalar_select %p316, %s19, 1
      %s318 = smul.addr %s317, 10
      %s319 = smul.addr %s318, 4
      %s320 = scalar_lea.vmem %s1, %s319
      %p321 = scmp.lt.s32.totalorder %s19, 1
      %s322 = scalar_select %p321, %s19, 1
      %s323 = smul.addr %s322, 10
      %s324 = smul.addr %s323, 4
      %s325 = scalar_lea.vmem %s8, %s324
      %v327 = vld [vmem:[%s315] sm:$0xf]
      %v328 = vld [vmem:[%s315 + $0x4] sm:$0xf]
      %v329 = vld [vmem:[%s315 + $0x8] sm:$0xf]
      %v330 = vld [vmem:[%s315 + $0xc] sm:$0xf]
      %v331 = vld [vmem:[%s315 + $0x10] sm:$0xf]
      %v332 = vld [vmem:[%s315 + $0x14] sm:$0xf]
      %v333 = vld [vmem:[%s315 + $0x18] sm:$0xf]
      %v334 = vld [vmem:[%s315 + $0x1c] sm:$0xf]
      %v335 = vld [vmem:[%s315 + $0x20] sm:$0xf]
      %v336 = vld [vmem:[%s315 + $0x24] sm:$0xf]
      %v337 = vld [vmem:[%s3] sm:$0xf]
      %v338 = vld [vmem:[%s3 + $0x4] sm:$0xf]
      %v339 = vld [vmem:[%s3 + $0x8] sm:$0xf]
      %v340 = vld [vmem:[%s3 + $0xc] sm:$0xf]
      %v341 = vld [vmem:[%s3 + $0x10] sm:$0x3]
      %v342 = vld [vmem:[%s4] sm:$0x1]
      %v344 = vlaneseq
      %v345 = vshrl.u32 %v344, 7
      %v346 = vsub.s32 0, %v345
      %v347 = vrot.slane %v342, %v346
      %v359 = vunpack.c.l.b16 %v327
      %v360 = vunpack.c.l.b16 %v328
      %v361 = vunpack.c.l.b16 %v329
      %v362 = vunpack.c.l.b16 %v330
      %v363 = vunpack.c.l.b16 %v331
      %v364 = vunpack.c.l.b16 %v332
      %v365 = vunpack.c.l.b16 %v333
      %v366 = vunpack.c.l.b16 %v334
      %v367 = vunpack.c.l.b16 %v335
      %v368 = vunpack.c.l.b16 %v336
      %v369 = vpack.c.b16 %v360, %v359
      %v370 = vpack.c.b16 %v362, %v361
      %v371 = vpack.c.b16 %v364, %v363
      %v372 = vpack.c.b16 %v366, %v365
      %v373 = vpack.c.b16 %v368, %v367
      %v379 = vunpack.c.l.b16 %v337
      %v380 = vunpack.c.l.b16 %v338
      %v381 = vunpack.c.l.b16 %v339
      %v382 = vunpack.c.l.b16 %v340
      %v383 = vunpack.c.l.b16 %v341
      %v384 = vpack.c.b16 %v380, %v379
      %v385 = vpack.c.b16 %v382, %v381
      %v386 = vpack.c.b16 %v383, %v383
      %vm389 = vcmask 293888
      %v391 = vsel %vm389, %v369, 0
      %v394 = vsel %vm389, %v370, 0
      %v397 = vsel %vm389, %v371, 0
      %v400 = vsel %vm389, %v372, 0
      %v403 = vsel %vm389, %v373, 0
      %vm405 = vcmask 1041408
      %v407 = vsel %vm405, %v386, 0
      %409 = vmatprep.subr.bf16.mxu0 0
      %410 = vmatpush1.bf16.msra.mxu0 %v384
      %411 = vmatprep.subr.bf16.mxu0 0
      %412 = vmatpush1.bf16.msra.mxu0 %v385
      %413 = vmatprep.subr.bf16.mxu0 0
      %414 = vmatpush1.bf16.msra.mxu0 %v407
      %415 = vmatprep.subr.bf16.mxu0 0
      %416 = vmatpush1.bf16.msra.mxu0 0
      %417 = vmatprep.subr.bf16.mxu0 0
      %418 = vmatpush1.bf16.msra.mxu0 0
      %419 = vmatprep.subr.bf16.mxu0 0
      %420 = vmatpush1.bf16.msra.mxu0 0
      %421 = vmatprep.subr.bf16.mxu0 0
      %422 = vmatpush1.bf16.msra.mxu0 0
      %423 = vmatprep.subr.bf16.mxu0 0
      %424 = vmatpush1.bf16.msra.mxu0 0
      %425 = vmatprep.subr.bf16.mxu0 0
      %426 = vmatpush1.bf16.msra.mxu0 0
      %427 = vmatprep.subr.bf16.mxu0 0
      %428 = vmatpush1.bf16.msra.mxu0 0
      %429 = vmatprep.subr.bf16.mxu0 0
      %430 = vmatpush1.bf16.msra.mxu0 0
      %431 = vmatprep.subr.bf16.mxu0 0
      %432 = vmatpush1.bf16.msra.mxu0 0
      %433 = vmatprep.subr.bf16.mxu0 0
      %434 = vmatpush1.bf16.msra.mxu0 0
      %435 = vmatprep.subr.bf16.mxu0 0
      %436 = vmatpush1.bf16.msra.mxu0 0
      %437 = vmatprep.subr.bf16.mxu0 0
      %438 = vmatpush1.bf16.msra.mxu0 0
      %439 = vmatprep.subr.bf16.mxu0 0
      %440 = vmatpush1.bf16.msra.mxu0 0
      %441 = vmatprep.mubr.bf16.mxu0 0
      %442 = vmatmul.mubr.bf16.gmra.mrb[0].mxu0 %v391
      %v443 = vpop.f32.mrb[0].mxu0
      %v444 = vadd.f32 %v347, %v443
      %v445 = vpop.f32.mrb[0].mxu0
      %v446 = vpop.f32.mrb[0].mxu0
      %v447 = vadd.f32 %v347, %v446
      %v448 = vpop.f32.mrb[0].mxu0
      %449 = vmatprep.mubr.bf16.mxu0 0
      %450 = vmatmul.mubr.bf16.gmra.mrb[0].mxu0 %v394
      %v451 = vpop.f32.mrb[0].mxu0
      %v452 = vadd.f32 %v347, %v451
      %v453 = vpop.f32.mrb[0].mxu0
      %v454 = vpop.f32.mrb[0].mxu0
      %v455 = vadd.f32 %v347, %v454
      %v456 = vpop.f32.mrb[0].mxu0
      %457 = vmatprep.mubr.bf16.mxu0 0
      %458 = vmatmul.mubr.bf16.gmra.mrb[0].mxu0 %v397
      %v459 = vpop.f32.mrb[0].mxu0
      %v460 = vadd.f32 %v347, %v459
      %v461 = vpop.f32.mrb[0].mxu0
      %v462 = vpop.f32.mrb[0].mxu0
      %v463 = vadd.f32 %v347, %v462
      %v464 = vpop.f32.mrb[0].mxu0
      %465 = vmatprep.mubr.bf16.mxu0 0
      %466 = vmatmul.mubr.bf16.gmra.mrb[0].mxu0 %v400
      %v467 = vpop.f32.mrb[0].mxu0
      %v468 = vadd.f32 %v347, %v467
      %v469 = vpop.f32.mrb[0].mxu0
      %v470 = vpop.f32.mrb[0].mxu0
      %v471 = vadd.f32 %v347, %v470
      %v472 = vpop.f32.mrb[0].mxu0
      %473 = vmatprep.mubr.bf16.mxu0 0
      %474 = vmatmul.mubr.bf16.gmra.mrb[0].mxu0 %v403
      %v475 = vpop.f32.mrb[0].mxu0
      %v476 = vadd.f32 %v347, %v475
      %v477 = vpop.f32.mrb[0].mxu0
      %v478 = vpop.f32.mrb[0].mxu0
      %v479 = vadd.f32 %v347, %v478
      %v480 = vpop.f32.mrb[0].mxu0
      %481 = vdwg.mxu0
      %v482 = vmax.f32 %v444, 0.0
      %v483 = vmax.f32 %v447, 0.0
      %v484 = vmax.f32 %v452, 0.0
      %v485 = vmax.f32 %v455, 0.0
      %v486 = vmax.f32 %v460, 0.0
      %v487 = vmax.f32 %v463, 0.0
      %v488 = vmax.f32 %v468, 0.0
      %v489 = vmax.f32 %v471, 0.0
      %v490 = vmax.f32 %v476, 0.0
      %v491 = vmax.f32 %v479, 0.0
      %v492 = vld [vmem:[%s320] sm:$0xf]
      %v493 = vld [vmem:[%s320 + $0x4] sm:$0xf]
      %v494 = vld [vmem:[%s320 + $0x8] sm:$0xf]
      %v495 = vld [vmem:[%s320 + $0xc] sm:$0xf]
      %v496 = vld [vmem:[%s320 + $0x10] sm:$0xf]
      %v497 = vld [vmem:[%s320 + $0x14] sm:$0xf]
      %v498 = vld [vmem:[%s320 + $0x18] sm:$0xf]
      %v499 = vld [vmem:[%s320 + $0x1c] sm:$0xf]
      %v500 = vld [vmem:[%s320 + $0x20] sm:$0xf]
      %v501 = vld [vmem:[%s320 + $0x24] sm:$0xf]
      %v502 = vld [vmem:[%s7] sm:$0xf]
      %v513 = vunpack.c.l.b16 %v492
      %v514 = vunpack.c.l.b16 %v493
      %v515 = vunpack.c.l.b16 %v494
      %v516 = vunpack.c.l.b16 %v495
      %v517 = vunpack.c.l.b16 %v496
      %v518 = vunpack.c.l.b16 %v497
      %v519 = vunpack.c.l.b16 %v498
      %v520 = vunpack.c.l.b16 %v499
      %v521 = vunpack.c.l.b16 %v500
      %v522 = vunpack.c.l.b16 %v501
      %v523 = vpack.c.b16 %v514, %v513
      %v524 = vpack.c.b16 %v516, %v515
      %v525 = vpack.c.b16 %v518, %v517
      %v526 = vpack.c.b16 %v520, %v519
      %v527 = vpack.c.b16 %v522, %v521
      %vm528 = vcmask 64512
      %v530 = vsel %vm528, %v523, 0
      %v533 = vsel %vm528, %v524, 0
      %v536 = vsel %vm528, %v525, 0
      %v539 = vsel %vm528, %v526, 0
      %v542 = vsel %vm528, %v527, 0
      %vm544 = vcmask 1043456
      %v546 = vsel %vm544, %v502, 0
      %548 = vmatprep.subr.bf16.mxu0 0
      %549 = vmatpush1.bf16.msra.mxu0 %v546
      %550 = vmatprep.subr.bf16.mxu0 0
      %551 = vmatpush1.bf16.msra.mxu0 0
      %552 = vmatprep.subr.bf16.mxu0 0
      %553 = vmatpush1.bf16.msra.mxu0 0
      %554 = vmatprep.subr.bf16.mxu0 0
      %555 = vmatpush1.bf16.msra.mxu0 0
      %556 = vmatprep.subr.bf16.mxu0 0
      %557 = vmatpush1.bf16.msra.mxu0 0
      %558 = vmatprep.subr.bf16.mxu0 0
      %559 = vmatpush1.bf16.msra.mxu0 0
      %560 = vmatprep.subr.bf16.mxu0 0
      %561 = vmatpush1.bf16.msra.mxu0 0
      %562 = vmatprep.subr.bf16.mxu0 0
      %563 = vmatpush1.bf16.msra.mxu0 0
      %564 = vmatprep.subr.bf16.mxu0 0
      %565 = vmatpush1.bf16.msra.mxu0 0
      %566 = vmatprep.subr.bf16.mxu0 0
      %567 = vmatpush1.bf16.msra.mxu0 0
      %568 = vmatprep.subr.bf16.mxu0 0
      %569 = vmatpush1.bf16.msra.mxu0 0
      %570 = vmatprep.subr.bf16.mxu0 0
      %571 = vmatpush1.bf16.msra.mxu0 0
      %572 = vmatprep.subr.bf16.mxu0 0
      %573 = vmatpush1.bf16.msra.mxu0 0
      %574 = vmatprep.subr.bf16.mxu0 0
      %575 = vmatpush1.bf16.msra.mxu0 0
      %576 = vmatprep.subr.bf16.mxu0 0
      %577 = vmatpush1.bf16.msra.mxu0 0
      %578 = vmatprep.subr.bf16.mxu0 0
      %579 = vmatpush1.bf16.msra.mxu0 0
      %580 = vmatprep.mubr.bf16.mxu0 0
      %581 = vmatmul.mubr.bf16.gmra.mrb[0].mxu0 %v530
      %v582 = vpop.f32.mrb[0].mxu0
      %v583 = vadd.f32 0.0, %v582
      %v584 = vpop.f32.mrb[0].mxu0
      %v585 = vpop.f32.mrb[0].mxu0
      %v586 = vadd.f32 0.0, %v585
      %v587 = vpop.f32.mrb[0].mxu0
      %588 = vmatprep.mubr.bf16.mxu0 0
      %589 = vmatmul.mubr.bf16.gmra.mrb[0].mxu0 %v533
      %v590 = vpop.f32.mrb[0].mxu0
      %v591 = vadd.f32 0.0, %v590
      %v592 = vpop.f32.mrb[0].mxu0
      %v593 = vpop.f32.mrb[0].mxu0
      %v594 = vadd.f32 0.0, %v593
      %v595 = vpop.f32.mrb[0].mxu0
      %596 = vmatprep.mubr.bf16.mxu0 0
      %597 = vmatmul.mubr.bf16.gmra.mrb[0].mxu0 %v536
      %v598 = vpop.f32.mrb[0].mxu0
      %v599 = vadd.f32 0.0, %v598
      %v600 = vpop.f32.mrb[0].mxu0
      %v601 = vpop.f32.mrb[0].mxu0
      %v602 = vadd.f32 0.0, %v601
      %v603 = vpop.f32.mrb[0].mxu0
      %604 = vmatprep.mubr.bf16.mxu0 0
      %605 = vmatmul.mubr.bf16.gmra.mrb[0].mxu0 %v539
      %v606 = vpop.f32.mrb[0].mxu0
      %v607 = vadd.f32 0.0, %v606
      %v608 = vpop.f32.mrb[0].mxu0
      %v609 = vpop.f32.mrb[0].mxu0
      %v610 = vadd.f32 0.0, %v609
      %v611 = vpop.f32.mrb[0].mxu0
      %612 = vmatprep.mubr.bf16.mxu0 0
      %613 = vmatmul.mubr.bf16.gmra.mrb[0].mxu0 %v542
      %v614 = vpop.f32.mrb[0].mxu0
      %v615 = vadd.f32 0.0, %v614
      %v616 = vpop.f32.mrb[0].mxu0
      %v617 = vpop.f32.mrb[0].mxu0
      %v618 = vadd.f32 0.0, %v617
      %v619 = vpop.f32.mrb[0].mxu0
      %620 = vdwg.mxu0
      %v621 = vld [vmem:[%s2] sm:$0xff]
      %v622 = vld [vmem:[%s2 + $0x8] sm:$0xff]
      %v623 = vld [vmem:[%s2 + $0x10] sm:$0xff]
      %v624 = vld [vmem:[%s2 + $0x18] sm:$0xff]
      %v625 = vld [vmem:[%s2 + $0x20] sm:$0xff]
      %v626 = vld [vmem:[%s2 + $0x28] sm:$0xff]
      %v627 = vld [vmem:[%s2 + $0x30] sm:$0xff]
      %v628 = vld [vmem:[%s2 + $0x38] sm:$0xff]
      %v629 = vld [vmem:[%s2 + $0x40] sm:$0xff]
      %v630 = vld [vmem:[%s2 + $0x48] sm:$0xff]
      %vm631 = vcmask 125952
      %632 = vst.msk [vmem:[#allocation2] sm:$0xf] %vm631, 0
      %vm633 = vcmask 123904
      %vm634 = vsmask.f32 1280
      %vm635 = vmand %vm633, %vm634
      %v636 = vld [vmem:[#allocation2 + $0x4] sm:$0x3]
      %v637 = vsel %vm635, 0, %v636
      %638 = vst [vmem:[#allocation2 + $0x4] sm:$0x3] %v637
      %vm639 = vcmask 125953
      %vm640 = vsmask.f32 7942
      %vm641 = vmand %vm639, %vm640
      %v642 = vld [vmem:[#allocation2 + $0x2c] sm:$0xe]
      %v643 = vsel %vm641, 0, %v642
      %644 = vst [vmem:[#allocation2 + $0x2c] sm:$0xe] %v643
      %645 = vst.msk [vmem:[#allocation2 + $0x30] sm:$0xf] %vm631, 0
      %vm646 = vcmask 123904
      %647 = vst.msk [vmem:[#allocation2 + $0x34] sm:$0x3] %vm646, 0
      %649 = vset.pattern.permute.xlu0 0
      %650 = vperm.xlu0 %649, %v621
      %v651 = vpop.permute.xlu0 %650
      %654 = vset.pattern.permute.xlu0 0
      %655 = vperm.xlu0 %654, %v622
      %v656 = vpop.permute.xlu0 %655
      %659 = vset.pattern.permute.xlu0 0
      %660 = vperm.xlu0 %659, %v623
      %v661 = vpop.permute.xlu0 %660
      %664 = vset.pattern.permute.xlu0 0
      %665 = vperm.xlu0 %664, %v624
      %v666 = vpop.permute.xlu0 %665
      %669 = vset.pattern.permute.xlu0 0
      %670 = vperm.xlu0 %669, %v625
      %v671 = vpop.permute.xlu0 %670
      %674 = vset.pattern.permute.xlu0 0
      %675 = vperm.xlu0 %674, %v626
      %v676 = vpop.permute.xlu0 %675
      %679 = vset.pattern.permute.xlu0 0
      %680 = vperm.xlu0 %679, %v627
      %v681 = vpop.permute.xlu0 %680
      %684 = vset.pattern.permute.xlu0 0
      %685 = vperm.xlu0 %684, %v628
      %v686 = vpop.permute.xlu0 %685
      %689 = vset.pattern.permute.xlu0 0
      %690 = vperm.xlu0 %689, %v629
      %v691 = vpop.permute.xlu0 %690
      %694 = vset.pattern.permute.xlu0 0
      %695 = vperm.xlu0 %694, %v630
      %v696 = vpop.permute.xlu0 %695
      %v698 = vmul.f32 %v482, %v651
      %v699 = vmul.f32 %v483, %v656
      %v700 = vmul.f32 %v484, %v661
      %v701 = vmul.f32 %v485, %v666
      %v702 = vmul.f32 %v486, %v671
      %v703 = vmul.f32 %v487, %v676
      %v704 = vmul.f32 %v488, %v681
      %v705 = vmul.f32 %v489, %v686
      %v706 = vmul.f32 %v490, %v691
      %v707 = vmul.f32 %v491, %v696
      %v708 = vpack.c.bf16 %v699, %v698
      %v709 = vpack.c.bf16 %v701, %v700
      %v710 = vpack.c.bf16 %v703, %v702
      %v711 = vpack.c.bf16 %v705, %v704
      %v712 = vpack.c.bf16 %v707, %v706
      %v718 = vunpack.c.l.b16 %v708
      %v719 = vunpack.c.h.b16 %v708
      %v720 = vunpack.c.l.b16 %v709
      %v721 = vunpack.c.h.b16 %v709
      %v722 = vunpack.c.l.b16 %v710
      %v723 = vunpack.c.h.b16 %v710
      %v724 = vunpack.c.l.b16 %v711
      %v725 = vunpack.c.h.b16 %v711
      %v726 = vunpack.c.l.b16 %v712
      %v727 = vunpack.c.h.b16 %v712
      %v728 = vpack.c.b16 %v718, %v718
      %v729 = vpack.c.b16 %v719, %v719
      %v730 = vpack.c.b16 %v720, %v720
      %v731 = vpack.c.b16 %v721, %v721
      %v732 = vpack.c.b16 %v722, %v722
      %v733 = vpack.c.b16 %v723, %v723
      %v734 = vpack.c.b16 %v724, %v724
      %v735 = vpack.c.b16 %v725, %v725
      %v736 = vpack.c.b16 %v726, %v726
      %v737 = vpack.c.b16 %v727, %v727
      %vm738 = vsmask.f32 5392
      %vm739 = vmor %vm634, %vm738
      %v741 = vshrl.u32 %v728, 16
      %v743 = vrot.slane %v741, 6
      %v744 = vshll.u32 %v728, 16
      %v746 = vrot.slane %v744, 7
      %v747 = vor.u32 %v743, %v746
      %v748 = vrot.slane %v747, 4
      %v750 = vshrl.u32 %v729, 16
      %v752 = vrot.slane %v750, 6
      %v753 = vshll.u32 %v729, 16
      %v755 = vrot.slane %v753, 7
      %v756 = vor.u32 %v752, %v755
      %v757 = vsel %vm739, %v748, %v756
      %v758 = vrot.slane %v756, 4
      %v760 = vshrl.u32 %v730, 16
      %v762 = vrot.slane %v760, 6
      %v763 = vshll.u32 %v730, 16
      %v765 = vrot.slane %v763, 7
      %v766 = vor.u32 %v762, %v765
      %v767 = vsel %vm739, %v758, %v766
      %v768 = vrot.slane %v766, 4
      %v770 = vshrl.u32 %v731, 16
      %v772 = vrot.slane %v770, 6
      %v773 = vshll.u32 %v731, 16
      %v775 = vrot.slane %v773, 7
      %v776 = vor.u32 %v772, %v775
      %v777 = vsel %vm739, %v768, %v776
      %v778 = vrot.slane %v776, 4
      %v780 = vshrl.u32 %v732, 16
      %v782 = vrot.slane %v780, 6
      %v783 = vshll.u32 %v732, 16
      %v785 = vrot.slane %v783, 7
      %v786 = vor.u32 %v782, %v785
      %v787 = vsel %vm739, %v778, %v786
      %v788 = vrot.slane %v786, 4
      %v790 = vshrl.u32 %v733, 16
      %v792 = vrot.slane %v790, 6
      %v793 = vshll.u32 %v733, 16
      %v795 = vrot.slane %v793, 7
      %v796 = vor.u32 %v792, %v795
      %v797 = vsel %vm739, %v788, %v796
      %v798 = vrot.slane %v796, 4
      %v800 = vshrl.u32 %v734, 16
      %v802 = vrot.slane %v800, 6
      %v803 = vshll.u32 %v734, 16
      %v805 = vrot.slane %v803, 7
      %v806 = vor.u32 %v802, %v805
      %v807 = vsel %vm739, %v798, %v806
      %v808 = vrot.slane %v806, 4
      %v810 = vshrl.u32 %v735, 16
      %v812 = vrot.slane %v810, 6
      %v813 = vshll.u32 %v735, 16
      %v815 = vrot.slane %v813, 7
      %v816 = vor.u32 %v812, %v815
      %v817 = vsel %vm739, %v808, %v816
      %v818 = vrot.slane %v816, 4
      %v820 = vshrl.u32 %v736, 16
      %v822 = vrot.slane %v820, 6
      %v823 = vshll.u32 %v736, 16
      %v825 = vrot.slane %v823, 7
      %v826 = vor.u32 %v822, %v825
      %v827 = vsel %vm739, %v818, %v826
      %v828 = vrot.slane %v826, 4
      %v830 = vshrl.u32 %v737, 16
      %v832 = vrot.slane %v830, 6
      %v833 = vshll.u32 %v737, 16
      %v835 = vrot.slane %v833, 7
      %v836 = vor.u32 %v832, %v835
      %v837 = vsel %vm739, %v828, %v836
      %v838 = vrot.slane %v836, 4
      %v850 = vld [vmem:[#allocation2 + $0x4] sm:$0xe]
      %v851 = vsel %vm641, %v747, %v850
      %852 = vst [vmem:[#allocation2 + $0x4] sm:$0xe] %v851
      %853 = vst.msk [vmem:[#allocation2 + $0x8] sm:$0xf] %vm631, %v757
      %854 = vst.msk [vmem:[#allocation2 + $0xc] sm:$0xf] %vm631, %v767
      %855 = vst.msk [vmem:[#allocation2 + $0x10] sm:$0xf] %vm631, %v777
      %856 = vst.msk [vmem:[#allocation2 + $0x14] sm:$0xf] %vm631, %v787
      %857 = vst.msk [vmem:[#allocation2 + $0x18] sm:$0xf] %vm631, %v797
      %858 = vst.msk [vmem:[#allocation2 + $0x1c] sm:$0xf] %vm631, %v807
      %859 = vst.msk [vmem:[#allocation2 + $0x20] sm:$0xf] %vm631, %v817
      %860 = vst.msk [vmem:[#allocation2 + $0x24] sm:$0xf] %vm631, %v827
      %861 = vst.msk [vmem:[#allocation2 + $0x28] sm:$0xf] %vm631, %v837
      %v862 = vld [vmem:[#allocation2 + $0x2c] sm:$0x3]
      %v863 = vsel %vm635, %v838, %v862
      %864 = vst [vmem:[#allocation2 + $0x2c] sm:$0x3] %v863
      %v865 = vld [vmem:[#allocation2] sm:$0xf]
      %v866 = vld [vmem:[#allocation2 + $0x4] sm:$0xf]
      %v867 = vld [vmem:[#allocation2 + $0x8] sm:$0xf]
      %v868 = vld [vmem:[#allocation2 + $0xc] sm:$0xf]
      %v869 = vld [vmem:[#allocation2 + $0x10] sm:$0xf]
      %v870 = vld [vmem:[#allocation2 + $0x14] sm:$0xf]
      %v871 = vld [vmem:[#allocation2 + $0x18] sm:$0xf]
      %v872 = vld [vmem:[#allocation2 + $0x1c] sm:$0xf]
      %v873 = vld [vmem:[#allocation2 + $0x20] sm:$0xf]
      %v874 = vld [vmem:[#allocation2 + $0x24] sm:$0xf]
      %v885 = vunpack.c.l.b16 %v865
      %v886 = vunpack.c.l.b16 %v866
      %v887 = vunpack.c.l.b16 %v867
      %v888 = vunpack.c.l.b16 %v868
      %v889 = vunpack.c.l.b16 %v869
      %v890 = vunpack.c.l.b16 %v870
      %v891 = vunpack.c.l.b16 %v871
      %v892 = vunpack.c.l.b16 %v872
      %v893 = vunpack.c.l.b16 %v873
      %v894 = vunpack.c.l.b16 %v874
      %v895 = vpack.c.b16 %v886, %v885
      %v896 = vpack.c.b16 %v888, %v887
      %v897 = vpack.c.b16 %v890, %v889
      %v898 = vpack.c.b16 %v892, %v891
      %v899 = vpack.c.b16 %v894, %v893
      %vm905 = vcmask 130048
      %906 = vst.msk [vmem:[#allocation3] sm:$0xff] %vm905, %v895
      %907 = vst.msk [vmem:[#allocation3 + $0x10] sm:$0xff] %vm905, %v896
      %908 = vst.msk [vmem:[#allocation3 + $0x20] sm:$0xff] %vm905, %v897
      %909 = vst.msk [vmem:[#allocation3 + $0x30] sm:$0xff] %vm905, %v898
      %910 = vst.msk [vmem:[#allocation3 + $0x40] sm:$0xff] %vm905, %v899
      %v911 = vld [vmem:[#allocation2] sm:$0xf]
      %v912 = vld [vmem:[#allocation2 + $0x4] sm:$0xf]
      %v913 = vld [vmem:[#allocation2 + $0x8] sm:$0xf]
      %v914 = vld [vmem:[#allocation2 + $0xc] sm:$0xf]
      %v915 = vld [vmem:[#allocation2 + $0x10] sm:$0xf]
      %v916 = vld [vmem:[#allocation2 + $0x14] sm:$0xf]
      %v917 = vld [vmem:[#allocation2 + $0x18] sm:$0xf]
      %v918 = vld [vmem:[#allocation2 + $0x1c] sm:$0xf]
      %v919 = vld [vmem:[#allocation2 + $0x20] sm:$0xf]
      %v920 = vld [vmem:[#allocation2 + $0x24] sm:$0xf]
      %v921 = vld [vmem:[#allocation2 + $0x28] sm:$0x1]
      %v933 = vunpack.c.l.b16 %v911
      %v934 = vunpack.c.l.b16 %v912
      %v935 = vunpack.c.l.b16 %v913
      %v936 = vunpack.c.l.b16 %v914
      %v937 = vunpack.c.l.b16 %v915
      %v938 = vunpack.c.l.b16 %v916
      %v939 = vunpack.c.l.b16 %v917
      %v940 = vunpack.c.l.b16 %v918
      %v941 = vunpack.c.l.b16 %v919
      %v942 = vunpack.c.l.b16 %v920
      %v943 = vunpack.c.l.b16 %v921
      %v944 = vpack.c.b16 %v934, %v933
      %v945 = vpack.c.b16 %v936, %v935
      %v946 = vpack.c.b16 %v938, %v937
      %v947 = vpack.c.b16 %v940, %v939
      %v948 = vpack.c.b16 %v942, %v941
      %v949 = vpack.c.b16 %v943, %v943
      %vm950 = vsmask.f32 7424
      %v952 = vshrl.u32 %v944, 16
      %v954 = vshll.u32 %v944, 16
      %v956 = vrot.slane %v954, 1
      %v957 = vor.u32 %v952, %v956
      %v959 = vshll.u32 %v945, 16
      %v961 = vrot.slane %v959, 1
      %v962 = vsel %vm950, %v957, %v961
      %v963 = vshrl.u32 %v945, 16
      %v965 = vor.u32 %v963, %v961
      %v967 = vshll.u32 %v946, 16
      %v969 = vrot.slane %v967, 1
      %v970 = vsel %vm950, %v965, %v969
      %v971 = vshrl.u32 %v946, 16
      %v973 = vor.u32 %v971, %v969
      %v975 = vshll.u32 %v947, 16
      %v977 = vrot.slane %v975, 1
      %v978 = vsel %vm950, %v973, %v977
      %v979 = vshrl.u32 %v947, 16
      %v981 = vor.u32 %v979, %v977
      %v983 = vshll.u32 %v948, 16
      %v985 = vrot.slane %v983, 1
      %v986 = vsel %vm950, %v981, %v985
      %v987 = vshrl.u32 %v948, 16
      %v989 = vor.u32 %v987, %v985
      %v991 = vshll.u32 %v949, 16
      %v993 = vrot.slane %v991, 1
      %v994 = vsel %vm950, %v989, %v993
      %995 = vrot.lane.b32.xlu0 %v962, 16
      %v996 = vpop.permute.xlu0 %995
      %997 = vrot.lane.b32.xlu0 %v970, 16
      %v998 = vpop.permute.xlu0 %997
      %999 = vrot.lane.b32.xlu0 %v978, 16
      %v1000 = vpop.permute.xlu0 %999
      %1001 = vrot.lane.b32.xlu0 %v986, 16
      %v1002 = vpop.permute.xlu0 %1001
      %1003 = vrot.lane.b32.xlu0 %v994, 16
      %v1004 = vpop.permute.xlu0 %1003
      %vm1010 = vcmask 261248
      %1011 = vst.msk [vmem:[#allocation3] sm:$0xff] %vm1010, %v996
      %1012 = vst.msk [vmem:[#allocation3 + $0x10] sm:$0xff] %vm1010, %v998
      %1013 = vst.msk [vmem:[#allocation3 + $0x20] sm:$0xff] %vm1010, %v1000
      %1014 = vst.msk [vmem:[#allocation3 + $0x30] sm:$0xff] %vm1010, %v1002
      %1015 = vst.msk [vmem:[#allocation3 + $0x40] sm:$0xff] %vm1010, %v1004
      %v1016 = vld [vmem:[#allocation2] sm:$0xe]
      %v1017 = vld [vmem:[#allocation2 + $0x4] sm:$0xf]
      %v1018 = vld [vmem:[#allocation2 + $0x8] sm:$0xf]
      %v1019 = vld [vmem:[#allocation2 + $0xc] sm:$0xf]
      %v1020 = vld [vmem:[#allocation2 + $0x10] sm:$0xf]
      %v1021 = vld [vmem:[#allocation2 + $0x14] sm:$0xf]
      %v1022 = vld [vmem:[#allocation2 + $0x18] sm:$0xf]
      %v1023 = vld [vmem:[#allocation2 + $0x1c] sm:$0xf]
      %v1024 = vld [vmem:[#allocation2 + $0x20] sm:$0xf]
      %v1025 = vld [vmem:[#allocation2 + $0x24] sm:$0xf]
      %v1026 = vld [vmem:[#allocation2 + $0x28] sm:$0x1]
      %v1038 = vunpack.c.l.b16 %v1016
      %v1039 = vunpack.c.l.b16 %v1017
      %v1040 = vunpack.c.l.b16 %v1018
      %v1041 = vunpack.c.l.b16 %v1019
      %v1042 = vunpack.c.l.b16 %v1020
      %v1043 = vunpack.c.l.b16 %v1021
      %v1044 = vunpack.c.l.b16 %v1022
      %v1045 = vunpack.c.l.b16 %v1023
      %v1046 = vunpack.c.l.b16 %v1024
      %v1047 = vunpack.c.l.b16 %v1025
      %v1048 = vunpack.c.l.b16 %v1026
      %v1049 = vpack.c.b16 %v1039, %v1038
      %v1050 = vpack.c.b16 %v1041, %v1040
      %v1051 = vpack.c.b16 %v1043, %v1042
      %v1052 = vpack.c.b16 %v1045, %v1044
      %v1053 = vpack.c.b16 %v1047, %v1046
      %v1054 = vpack.c.b16 %v1048, %v1048
      %vm1055 = vcmask 1046528
      %v1056 = vrot.slane %v1049, 1
      %v1057 = vrot.slane %v1050, 1
      %v1058 = vsel %vm1055, %v1056, %v1057
      %v1059 = vrot.slane %v1051, 1
      %v1060 = vsel %vm1055, %v1057, %v1059
      %v1061 = vrot.slane %v1052, 1
      %v1062 = vsel %vm1055, %v1059, %v1061
      %v1063 = vrot.slane %v1053, 1
      %v1064 = vsel %vm1055, %v1061, %v1063
      %v1065 = vrot.slane %v1054, 1
      %v1066 = vsel %vm1055, %v1063, %v1065
      %1067 = vrot.lane.b32.xlu0 %v1058, 32
      %v1068 = vpop.permute.xlu0 %1067
      %1069 = vrot.lane.b32.xlu0 %v1060, 32
      %v1070 = vpop.permute.xlu0 %1069
      %1071 = vrot.lane.b32.xlu0 %v1062, 32
      %v1072 = vpop.permute.xlu0 %1071
      %1073 = vrot.lane.b32.xlu0 %v1064, 32
      %v1074 = vpop.permute.xlu0 %1073
      %1075 = vrot.lane.b32.xlu0 %v1066, 32
      %v1076 = vpop.permute.xlu0 %1075
      %vm1082 = vcmask 392448
      %1083 = vst.msk [vmem:[#allocation3] sm:$0xff] %vm1082, %v1068
      %1084 = vst.msk [vmem:[#allocation3 + $0x10] sm:$0xff] %vm1082, %v1070
      %1085 = vst.msk [vmem:[#allocation3 + $0x20] sm:$0xff] %vm1082, %v1072
      %1086 = vst.msk [vmem:[#allocation3 + $0x30] sm:$0xff] %vm1082, %v1074
      %1087 = vst.msk [vmem:[#allocation3 + $0x40] sm:$0xff] %vm1082, %v1076
      %v1088 = vld [vmem:[#allocation2 + $0x4] sm:$0xe]
      %v1089 = vld [vmem:[#allocation2 + $0x8] sm:$0xf]
      %v1090 = vld [vmem:[#allocation2 + $0xc] sm:$0xf]
      %v1091 = vld [vmem:[#allocation2 + $0x10] sm:$0xf]
      %v1092 = vld [vmem:[#allocation2 + $0x14] sm:$0xf]
      %v1093 = vld [vmem:[#allocation2 + $0x18] sm:$0xf]
      %v1094 = vld [vmem:[#allocation2 + $0x1c] sm:$0xf]
      %v1095 = vld [vmem:[#allocation2 + $0x20] sm:$0xf]
      %v1096 = vld [vmem:[#allocation2 + $0x24] sm:$0xf]
      %v1097 = vld [vmem:[#allocation2 + $0x28] sm:$0xf]
      %v1098 = vld [vmem:[#allocation2 + $0x2c] sm:$0x1]
      %v1110 = vunpack.c.l.b16 %v1088
      %v1111 = vunpack.c.l.b16 %v1089
      %v1112 = vunpack.c.l.b16 %v1090
      %v1113 = vunpack.c.l.b16 %v1091
      %v1114 = vunpack.c.l.b16 %v1092
      %v1115 = vunpack.c.l.b16 %v1093
      %v1116 = vunpack.c.l.b16 %v1094
      %v1117 = vunpack.c.l.b16 %v1095
      %v1118 = vunpack.c.l.b16 %v1096
      %v1119 = vunpack.c.l.b16 %v1097
      %v1120 = vunpack.c.l.b16 %v1098
      %v1121 = vpack.c.b16 %v1111, %v1110
      %v1122 = vpack.c.b16 %v1113, %v1112
      %v1123 = vpack.c.b16 %v1115, %v1114
      %v1124 = vpack.c.b16 %v1117, %v1116
      %v1125 = vpack.c.b16 %v1119, %v1118
      %v1126 = vpack.c.b16 %v1120, %v1120
      %v1127 = vrot.slane %v1121, 1
      %v1128 = vrot.slane %v1122, 1
      %v1129 = vsel %vm1055, %v1127, %v1128
      %v1130 = vrot.slane %v1123, 1
      %v1131 = vsel %vm1055, %v1128, %v1130
      %v1132 = vrot.slane %v1124, 1
      %v1133 = vsel %vm1055, %v1130, %v1132
      %v1134 = vrot.slane %v1125, 1
      %v1135 = vsel %vm1055, %v1132, %v1134
      %v1136 = vrot.slane %v1126, 1
      %v1137 = vsel %vm1055, %v1134, %v1136
      %1138 = vrot.lane.b32.xlu0 %v1129, 48
      %v1139 = vpop.permute.xlu0 %1138
      %1140 = vrot.lane.b32.xlu0 %v1131, 48
      %v1141 = vpop.permute.xlu0 %1140
      %1142 = vrot.lane.b32.xlu0 %v1133, 48
      %v1143 = vpop.permute.xlu0 %1142
      %1144 = vrot.lane.b32.xlu0 %v1135, 48
      %v1145 = vpop.permute.xlu0 %1144
      %1146 = vrot.lane.b32.xlu0 %v1137, 48
      %v1147 = vpop.permute.xlu0 %1146
      %vm1153 = vcmask 523648
      %1154 = vst.msk [vmem:[#allocation3] sm:$0xff] %vm1153, %v1139
      %1155 = vst.msk [vmem:[#allocation3 + $0x10] sm:$0xff] %vm1153, %v1141
      %1156 = vst.msk [vmem:[#allocation3 + $0x20] sm:$0xff] %vm1153, %v1143
      %1157 = vst.msk [vmem:[#allocation3 + $0x30] sm:$0xff] %vm1153, %v1145
      %1158 = vst.msk [vmem:[#allocation3 + $0x40] sm:$0xff] %vm1153, %v1147
      %v1159 = vld [vmem:[#allocation2 + $0x4] sm:$0xe]
      %v1160 = vld [vmem:[#allocation2 + $0x8] sm:$0xf]
      %v1161 = vld [vmem:[#allocation2 + $0xc] sm:$0xf]
      %v1162 = vld [vmem:[#allocation2 + $0x10] sm:$0xf]
      %v1163 = vld [vmem:[#allocation2 + $0x14] sm:$0xf]
      %v1164 = vld [vmem:[#allocation2 + $0x18] sm:$0xf]
      %v1165 = vld [vmem:[#allocation2 + $0x1c] sm:$0xf]
      %v1166 = vld [vmem:[#allocation2 + $0x20] sm:$0xf]
      %v1167 = vld [vmem:[#allocation2 + $0x24] sm:$0xf]
      %v1168 = vld [vmem:[#allocation2 + $0x28] sm:$0xf]
      %v1169 = vld [vmem:[#allocation2 + $0x2c] sm:$0x3]
      %v1181 = vunpack.c.l.b16 %v1159
      %v1182 = vunpack.c.l.b16 %v1160
      %v1183 = vunpack.c.l.b16 %v1161
      %v1184 = vunpack.c.l.b16 %v1162
      %v1185 = vunpack.c.l.b16 %v1163
      %v1186 = vunpack.c.l.b16 %v1164
      %v1187 = vunpack.c.l.b16 %v1165
      %v1188 = vunpack.c.l.b16 %v1166
      %v1189 = vunpack.c.l.b16 %v1167
      %v1190 = vunpack.c.l.b16 %v1168
      %v1191 = vunpack.c.l.b16 %v1169
      %v1192 = vpack.c.b16 %v1182, %v1181
      %v1193 = vpack.c.b16 %v1184, %v1183
      %v1194 = vpack.c.b16 %v1186, %v1185
      %v1195 = vpack.c.b16 %v1188, %v1187
      %v1196 = vpack.c.b16 %v1190, %v1189
      %v1197 = vpack.c.b16 %v1191, %v1191
      %vm1198 = vsmask.f32 6400
      %v1200 = vshrl.u32 %v1192, 16
      %v1202 = vrot.slane %v1200, 1
      %v1203 = vshll.u32 %v1192, 16
      %v1205 = vrot.slane %v1203, 2
      %v1206 = vor.u32 %v1202, %v1205
      %v1208 = vshrl.u32 %v1193, 16
      %v1210 = vrot.slane %v1208, 1
      %v1211 = vshll.u32 %v1193, 16
      %v1213 = vrot.slane %v1211, 2
      %v1214 = vor.u32 %v1210, %v1213
      %v1215 = vsel %vm1198, %v1206, %v1214
      %v1217 = vshrl.u32 %v1194, 16
      %v1219 = vrot.slane %v1217, 1
      %v1220 = vshll.u32 %v1194, 16
      %v1222 = vrot.slane %v1220, 2
      %v1223 = vor.u32 %v1219, %v1222
      %v1224 = vsel %vm1198, %v1214, %v1223
      %v1226 = vshrl.u32 %v1195, 16
      %v1228 = vrot.slane %v1226, 1
      %v1229 = vshll.u32 %v1195, 16
      %v1231 = vrot.slane %v1229, 2
      %v1232 = vor.u32 %v1228, %v1231
      %v1233 = vsel %vm1198, %v1223, %v1232
      %v1235 = vshrl.u32 %v1196, 16
      %v1237 = vrot.slane %v1235, 1
      %v1238 = vshll.u32 %v1196, 16
      %v1240 = vrot.slane %v1238, 2
      %v1241 = vor.u32 %v1237, %v1240
      %v1242 = vsel %vm1198, %v1232, %v1241
      %v1244 = vshrl.u32 %v1197, 16
      %v1246 = vrot.slane %v1244, 1
      %v1247 = vshll.u32 %v1197, 16
      %v1249 = vrot.slane %v1247, 2
      %v1250 = vor.u32 %v1246, %v1249
      %v1251 = vsel %vm1198, %v1241, %v1250
      %1252 = vrot.lane.b32.xlu0 %v1215, 64
      %v1253 = vpop.permute.xlu0 %1252
      %1254 = vrot.lane.b32.xlu0 %v1224, 64
      %v1255 = vpop.permute.xlu0 %1254
      %1256 = vrot.lane.b32.xlu0 %v1233, 64
      %v1257 = vpop.permute.xlu0 %1256
      %1258 = vrot.lane.b32.xlu0 %v1242, 64
      %v1259 = vpop.permute.xlu0 %1258
      %1260 = vrot.lane.b32.xlu0 %v1251, 64
      %v1261 = vpop.permute.xlu0 %1260
      %vm1267 = vcmask 654848
      %1268 = vst.msk [vmem:[#allocation3] sm:$0xff] %vm1267, %v1253
      %1269 = vst.msk [vmem:[#allocation3 + $0x10] sm:$0xff] %vm1267, %v1255
      %1270 = vst.msk [vmem:[#allocation3 + $0x20] sm:$0xff] %vm1267, %v1257
      %1271 = vst.msk [vmem:[#allocation3 + $0x30] sm:$0xff] %vm1267, %v1259
      %1272 = vst.msk [vmem:[#allocation3 + $0x40] sm:$0xff] %vm1267, %v1261
      %v1273 = vld [vmem:[#allocation2 + $0x4] sm:$0xc]
      %v1274 = vld [vmem:[#allocation2 + $0x8] sm:$0xf]
      %v1275 = vld [vmem:[#allocation2 + $0xc] sm:$0xf]
      %v1276 = vld [vmem:[#allocation2 + $0x10] sm:$0xf]
      %v1277 = vld [vmem:[#allocation2 + $0x14] sm:$0xf]
      %v1278 = vld [vmem:[#allocation2 + $0x18] sm:$0xf]
      %v1279 = vld [vmem:[#allocation2 + $0x1c] sm:$0xf]
      %v1280 = vld [vmem:[#allocation2 + $0x20] sm:$0xf]
      %v1281 = vld [vmem:[#allocation2 + $0x24] sm:$0xf]
      %v1282 = vld [vmem:[#allocation2 + $0x28] sm:$0xf]
      %v1283 = vld [vmem:[#allocation2 + $0x2c] sm:$0x3]
      %v1295 = vunpack.c.l.b16 %v1273
      %v1296 = vunpack.c.l.b16 %v1274
      %v1297 = vunpack.c.l.b16 %v1275
      %v1298 = vunpack.c.l.b16 %v1276
      %v1299 = vunpack.c.l.b16 %v1277
      %v1300 = vunpack.c.l.b16 %v1278
      %v1301 = vunpack.c.l.b16 %v1279
      %v1302 = vunpack.c.l.b16 %v1280
      %v1303 = vunpack.c.l.b16 %v1281
      %v1304 = vunpack.c.l.b16 %v1282
      %v1305 = vunpack.c.l.b16 %v1283
      %v1306 = vpack.c.b16 %v1296, %v1295
      %v1307 = vpack.c.b16 %v1298, %v1297
      %v1308 = vpack.c.b16 %v1300, %v1299
      %v1309 = vpack.c.b16 %v1302, %v1301
      %v1310 = vpack.c.b16 %v1304, %v1303
      %v1311 = vpack.c.b16 %v1305, %v1305
      %vm1312 = vcmask 1045504
      %v1313 = vrot.slane %v1306, 2
      %v1314 = vrot.slane %v1307, 2
      %v1315 = vsel %vm1312, %v1313, %v1314
      %v1316 = vrot.slane %v1308, 2
      %v1317 = vsel %vm1312, %v1314, %v1316
      %v1318 = vrot.slane %v1309, 2
      %v1319 = vsel %vm1312, %v1316, %v1318
      %v1320 = vrot.slane %v1310, 2
      %v1321 = vsel %vm1312, %v1318, %v1320
      %v1322 = vrot.slane %v1311, 2
      %v1323 = vsel %vm1312, %v1320, %v1322
      %1324 = vrot.lane.b32.xlu0 %v1315, 80
      %v1325 = vpop.permute.xlu0 %1324
      %1326 = vrot.lane.b32.xlu0 %v1317, 80
      %v1327 = vpop.permute.xlu0 %1326
      %1328 = vrot.lane.b32.xlu0 %v1319, 80
      %v1329 = vpop.permute.xlu0 %1328
      %1330 = vrot.lane.b32.xlu0 %v1321, 80
      %v1331 = vpop.permute.xlu0 %1330
      %1332 = vrot.lane.b32.xlu0 %v1323, 80
      %v1333 = vpop.permute.xlu0 %1332
      %vm1339 = vcmask 786048
      %1340 = vst.msk [vmem:[#allocation3] sm:$0xff] %vm1339, %v1325
      %1341 = vst.msk [vmem:[#allocation3 + $0x10] sm:$0xff] %vm1339, %v1327
      %1342 = vst.msk [vmem:[#allocation3 + $0x20] sm:$0xff] %vm1339, %v1329
      %1343 = vst.msk [vmem:[#allocation3 + $0x30] sm:$0xff] %vm1339, %v1331
      %1344 = vst.msk [vmem:[#allocation3 + $0x40] sm:$0xff] %vm1339, %v1333
      %v1345 = vld [vmem:[#allocation2 + $0x8] sm:$0xc]
      %v1346 = vld [vmem:[#allocation2 + $0xc] sm:$0xf]
      %v1347 = vld [vmem:[#allocation2 + $0x10] sm:$0xf]
      %v1348 = vld [vmem:[#allocation2 + $0x14] sm:$0xf]
      %v1349 = vld [vmem:[#allocation2 + $0x18] sm:$0xf]
      %v1350 = vld [vmem:[#allocation2 + $0x1c] sm:$0xf]
      %v1351 = vld [vmem:[#allocation2 + $0x20] sm:$0xf]
      %v1352 = vld [vmem:[#allocation2 + $0x24] sm:$0xf]
      %v1353 = vld [vmem:[#allocation2 + $0x28] sm:$0xf]
      %v1354 = vld [vmem:[#allocation2 + $0x2c] sm:$0xf]
      %v1355 = vld [vmem:[#allocation2 + $0x30] sm:$0x3]
      %v1367 = vunpack.c.l.b16 %v1345
      %v1368 = vunpack.c.l.b16 %v1346
      %v1369 = vunpack.c.l.b16 %v1347
      %v1370 = vunpack.c.l.b16 %v1348
      %v1371 = vunpack.c.l.b16 %v1349
      %v1372 = vunpack.c.l.b16 %v1350
      %v1373 = vunpack.c.l.b16 %v1351
      %v1374 = vunpack.c.l.b16 %v1352
      %v1375 = vunpack.c.l.b16 %v1353
      %v1376 = vunpack.c.l.b16 %v1354
      %v1377 = vunpack.c.l.b16 %v1355
      %v1378 = vpack.c.b16 %v1368, %v1367
      %v1379 = vpack.c.b16 %v1370, %v1369
      %v1380 = vpack.c.b16 %v1372, %v1371
      %v1381 = vpack.c.b16 %v1374, %v1373
      %v1382 = vpack.c.b16 %v1376, %v1375
      %v1383 = vpack.c.b16 %v1377, %v1377
      %v1384 = vrot.slane %v1378, 2
      %v1385 = vrot.slane %v1379, 2
      %v1386 = vsel %vm1312, %v1384, %v1385
      %v1387 = vrot.slane %v1380, 2
      %v1388 = vsel %vm1312, %v1385, %v1387
      %v1389 = vrot.slane %v1381, 2
      %v1390 = vsel %vm1312, %v1387, %v1389
      %v1391 = vrot.slane %v1382, 2
      %v1392 = vsel %vm1312, %v1389, %v1391
      %v1393 = vrot.slane %v1383, 2
      %v1394 = vsel %vm1312, %v1391, %v1393
      %1395 = vrot.lane.b32.xlu0 %v1386, 96
      %v1396 = vpop.permute.xlu0 %1395
      %1397 = vrot.lane.b32.xlu0 %v1388, 96
      %v1398 = vpop.permute.xlu0 %1397
      %1399 = vrot.lane.b32.xlu0 %v1390, 96
      %v1400 = vpop.permute.xlu0 %1399
      %1401 = vrot.lane.b32.xlu0 %v1392, 96
      %v1402 = vpop.permute.xlu0 %1401
      %1403 = vrot.lane.b32.xlu0 %v1394, 96
      %v1404 = vpop.permute.xlu0 %1403
      %vm1410 = vcmask 917248
      %1411 = vst.msk [vmem:[#allocation3] sm:$0xff] %vm1410, %v1396
      %1412 = vst.msk [vmem:[#allocation3 + $0x10] sm:$0xff] %vm1410, %v1398
      %1413 = vst.msk [vmem:[#allocation3 + $0x20] sm:$0xff] %vm1410, %v1400
      %1414 = vst.msk [vmem:[#allocation3 + $0x30] sm:$0xff] %vm1410, %v1402
      %1415 = vst.msk [vmem:[#allocation3 + $0x40] sm:$0xff] %vm1410, %v1404
      %v1416 = vld [vmem:[#allocation2 + $0x8] sm:$0xc]
      %v1417 = vld [vmem:[#allocation2 + $0xc] sm:$0xf]
      %v1418 = vld [vmem:[#allocation2 + $0x10] sm:$0xf]
      %v1419 = vld [vmem:[#allocation2 + $0x14] sm:$0xf]
      %v1420 = vld [vmem:[#allocation2 + $0x18] sm:$0xf]
      %v1421 = vld [vmem:[#allocation2 + $0x1c] sm:$0xf]
      %v1422 = vld [vmem:[#allocation2 + $0x20] sm:$0xf]
      %v1423 = vld [vmem:[#allocation2 + $0x24] sm:$0xf]
      %v1424 = vld [vmem:[#allocation2 + $0x28] sm:$0xf]
      %v1425 = vld [vmem:[#allocation2 + $0x2c] sm:$0xf]
      %v1426 = vld [vmem:[#allocation2 + $0x30] sm:$0x7]
      %v1438 = vunpack.c.l.b16 %v1416
      %v1439 = vunpack.c.l.b16 %v1417
      %v1440 = vunpack.c.l.b16 %v1418
      %v1441 = vunpack.c.l.b16 %v1419
      %v1442 = vunpack.c.l.b16 %v1420
      %v1443 = vunpack.c.l.b16 %v1421
      %v1444 = vunpack.c.l.b16 %v1422
      %v1445 = vunpack.c.l.b16 %v1423
      %v1446 = vunpack.c.l.b16 %v1424
      %v1447 = vunpack.c.l.b16 %v1425
      %v1448 = vunpack.c.l.b16 %v1426
      %v1449 = vpack.c.b16 %v1439, %v1438
      %v1450 = vpack.c.b16 %v1441, %v1440
      %v1451 = vpack.c.b16 %v1443, %v1442
      %v1452 = vpack.c.b16 %v1445, %v1444
      %v1453 = vpack.c.b16 %v1447, %v1446
      %v1454 = vpack.c.b16 %v1448, %v1448
      %vm1455 = vsmask.f32 5376
      %v1457 = vshrl.u32 %v1449, 16
      %v1459 = vrot.slane %v1457, 2
      %v1460 = vshll.u32 %v1449, 16
      %v1462 = vrot.slane %v1460, 3
      %v1463 = vor.u32 %v1459, %v1462
      %v1465 = vshrl.u32 %v1450, 16
      %v1467 = vrot.slane %v1465, 2
      %v1468 = vshll.u32 %v1450, 16
      %v1470 = vrot.slane %v1468, 3
      %v1471 = vor.u32 %v1467, %v1470
      %v1472 = vsel %vm1455, %v1463, %v1471
      %v1474 = vshrl.u32 %v1451, 16
      %v1476 = vrot.slane %v1474, 2
      %v1477 = vshll.u32 %v1451, 16
      %v1479 = vrot.slane %v1477, 3
      %v1480 = vor.u32 %v1476, %v1479
      %v1481 = vsel %vm1455, %v1471, %v1480
      %v1483 = vshrl.u32 %v1452, 16
      %v1485 = vrot.slane %v1483, 2
      %v1486 = vshll.u32 %v1452, 16
      %v1488 = vrot.slane %v1486, 3
      %v1489 = vor.u32 %v1485, %v1488
      %v1490 = vsel %vm1455, %v1480, %v1489
      %v1492 = vshrl.u32 %v1453, 16
      %v1494 = vrot.slane %v1492, 2
      %v1495 = vshll.u32 %v1453, 16
      %v1497 = vrot.slane %v1495, 3
      %v1498 = vor.u32 %v1494, %v1497
      %v1499 = vsel %vm1455, %v1489, %v1498
      %v1501 = vshrl.u32 %v1454, 16
      %v1503 = vrot.slane %v1501, 2
      %v1504 = vshll.u32 %v1454, 16
      %v1506 = vrot.slane %v1504, 3
      %v1507 = vor.u32 %v1503, %v1506
      %v1508 = vsel %vm1455, %v1498, %v1507
      %1509 = vrot.lane.b32.xlu0 %v1472, 112
      %v1510 = vpop.permute.xlu0 %1509
      %1511 = vrot.lane.b32.xlu0 %v1481, 112
      %v1512 = vpop.permute.xlu0 %1511
      %1513 = vrot.lane.b32.xlu0 %v1490, 112
      %v1514 = vpop.permute.xlu0 %1513
      %1515 = vrot.lane.b32.xlu0 %v1499, 112
      %v1516 = vpop.permute.xlu0 %1515
      %1517 = vrot.lane.b32.xlu0 %v1508, 112
      %v1518 = vpop.permute.xlu0 %1517
      %vm1524 = vcmask 1048448
      %1525 = vst.msk [vmem:[#allocation3] sm:$0xff] %vm1524, %v1510
      %1526 = vst.msk [vmem:[#allocation3 + $0x10] sm:$0xff] %vm1524, %v1512
      %1527 = vst.msk [vmem:[#allocation3 + $0x20] sm:$0xff] %vm1524, %v1514
      %1528 = vst.msk [vmem:[#allocation3 + $0x30] sm:$0xff] %vm1524, %v1516
      %1529 = vst.msk [vmem:[#allocation3 + $0x40] sm:$0xff] %vm1524, %v1518
      %v1530 = vld [vmem:[#allocation2 + $0x8] sm:$0x8]
      %v1531 = vld [vmem:[#allocation2 + $0xc] sm:$0xf]
      %v1532 = vld [vmem:[#allocation2 + $0x10] sm:$0xf]
      %v1533 = vld [vmem:[#allocation2 + $0x14] sm:$0xf]
      %v1534 = vld [vmem:[#allocation2 + $0x18] sm:$0xf]
      %v1535 = vld [vmem:[#allocation2 + $0x1c] sm:$0xf]
      %v1536 = vld [vmem:[#allocation2 + $0x20] sm:$0xf]
      %v1537 = vld [vmem:[#allocation2 + $0x24] sm:$0xf]
      %v1538 = vld [vmem:[#allocation2 + $0x28] sm:$0xf]
      %v1539 = vld [vmem:[#allocation2 + $0x2c] sm:$0xf]
      %v1540 = vld [vmem:[#allocation2 + $0x30] sm:$0x7]
      %v1552 = vunpack.c.l.b16 %v1530
      %v1553 = vunpack.c.l.b16 %v1531
      %v1554 = vunpack.c.l.b16 %v1532
      %v1555 = vunpack.c.l.b16 %v1533
      %v1556 = vunpack.c.l.b16 %v1534
      %v1557 = vunpack.c.l.b16 %v1535
      %v1558 = vunpack.c.l.b16 %v1536
      %v1559 = vunpack.c.l.b16 %v1537
      %v1560 = vunpack.c.l.b16 %v1538
      %v1561 = vunpack.c.l.b16 %v1539
      %v1562 = vunpack.c.l.b16 %v1540
      %v1563 = vpack.c.b16 %v1553, %v1552
      %v1564 = vpack.c.b16 %v1555, %v1554
      %v1565 = vpack.c.b16 %v1557, %v1556
      %v1566 = vpack.c.b16 %v1559, %v1558
      %v1567 = vpack.c.b16 %v1561, %v1560
      %v1568 = vpack.c.b16 %v1562, %v1562
      %vm1569 = vcmask 1044480
      %v1570 = vrot.slane %v1563, 3
      %v1571 = vrot.slane %v1564, 3
      %v1572 = vsel %vm1569, %v1570, %v1571
      %v1573 = vrot.slane %v1565, 3
      %v1574 = vsel %vm1569, %v1571, %v1573
      %v1575 = vrot.slane %v1566, 3
      %v1576 = vsel %vm1569, %v1573, %v1575
      %v1577 = vrot.slane %v1567, 3
      %v1578 = vsel %vm1569, %v1575, %v1577
      %v1579 = vrot.slane %v1568, 3
      %v1580 = vsel %vm1569, %v1577, %v1579
      %1586 = vst.msk [vmem:[#allocation3 + $0x8] sm:$0xff] %vm905, %v1572
      %1587 = vst.msk [vmem:[#allocation3 + $0x18] sm:$0xff] %vm905, %v1574
      %1588 = vst.msk [vmem:[#allocation3 + $0x28] sm:$0xff] %vm905, %v1576
      %1589 = vst.msk [vmem:[#allocation3 + $0x38] sm:$0xff] %vm905, %v1578
      %1590 = vst.msk [vmem:[#allocation3 + $0x48] sm:$0xff] %vm905, %v1580
      %v1591 = vld [vmem:[#allocation3] sm:$0xff]
      %v1592 = vld [vmem:[#allocation3 + $0x8] sm:$0xff]
      %v1593 = vld [vmem:[#allocation3 + $0x10] sm:$0xff]
      %v1594 = vld [vmem:[#allocation3 + $0x18] sm:$0xff]
      %v1595 = vld [vmem:[#allocation3 + $0x20] sm:$0xff]
      %v1596 = vld [vmem:[#allocation3 + $0x28] sm:$0xff]
      %v1597 = vld [vmem:[#allocation3 + $0x30] sm:$0xff]
      %v1598 = vld [vmem:[#allocation3 + $0x38] sm:$0xff]
      %v1599 = vld [vmem:[#allocation3 + $0x40] sm:$0xff]
      %v1600 = vld [vmem:[#allocation3 + $0x48] sm:$0xff]
      %v1601 = vld [vmem:[%s5] sm:$0xf]
      %v1602 = vld [vmem:[%s5 + $0x4] sm:$0xf]
      %v1603 = vld [vmem:[%s5 + $0x8] sm:$0xf]
      %v1604 = vld [vmem:[%s5 + $0xc] sm:$0xf]
      %v1605 = vld [vmem:[%s5 + $0x10] sm:$0xf]
      %v1606 = vld [vmem:[%s5 + $0x14] sm:$0xf]
      %v1607 = vld [vmem:[%s5 + $0x18] sm:$0xf]
      %v1608 = vld [vmem:[%s5 + $0x1c] sm:$0xf]
      %v1609 = vld [vmem:[%s5 + $0x20] sm:$0xf]
      %v1610 = vld [vmem:[%s5 + $0x24] sm:$0xf]
      %v1611 = vld [vmem:[%s5 + $0x28] sm:$0xf]
      %v1612 = vld [vmem:[%s5 + $0x2c] sm:$0xf]
      %v1613 = vld [vmem:[%s5 + $0x30] sm:$0xf]
      %v1614 = vld [vmem:[%s5 + $0x34] sm:$0xf]
      %v1615 = vld [vmem:[%s5 + $0x38] sm:$0xf]
      %v1616 = vld [vmem:[%s5 + $0x3c] sm:$0xf]
      %v1617 = vld [vmem:[%s5 + $0x40] sm:$0xf]
      %v1618 = vld [vmem:[%s5 + $0x44] sm:$0xf]
      %v1619 = vld [vmem:[%s6] sm:$0x1]
      %v1621 = vlaneseq
      %v1622 = vshrl.u32 %v1621, 7
      %v1623 = vsub.s32 0, %v1622
      %v1624 = vrot.slane %v1619, %v1623
      %v1644 = vunpack.c.l.b16 %v1601
      %v1645 = vunpack.c.l.b16 %v1602
      %v1646 = vunpack.c.l.b16 %v1603
      %v1647 = vunpack.c.l.b16 %v1604
      %v1648 = vunpack.c.l.b16 %v1605
      %v1649 = vunpack.c.l.b16 %v1606
      %v1650 = vunpack.c.l.b16 %v1607
      %v1651 = vunpack.c.l.b16 %v1608
      %v1652 = vunpack.c.l.b16 %v1609
      %v1653 = vunpack.c.l.b16 %v1610
      %v1654 = vunpack.c.l.b16 %v1611
      %v1655 = vunpack.c.l.b16 %v1612
      %v1656 = vunpack.c.l.b16 %v1613
      %v1657 = vunpack.c.l.b16 %v1614
      %v1658 = vunpack.c.l.b16 %v1615
      %v1659 = vunpack.c.l.b16 %v1616
      %v1660 = vunpack.c.l.b16 %v1617
      %v1661 = vunpack.c.l.b16 %v1618
      %v1662 = vpack.c.b16 %v1645, %v1644
      %v1663 = vpack.c.b16 %v1647, %v1646
      %v1664 = vpack.c.b16 %v1649, %v1648
      %v1665 = vpack.c.b16 %v1651, %v1650
      %v1666 = vpack.c.b16 %v1653, %v1652
      %v1667 = vpack.c.b16 %v1655, %v1654
      %v1668 = vpack.c.b16 %v1657, %v1656
      %v1669 = vpack.c.b16 %v1659, %v1658
      %v1670 = vpack.c.b16 %v1661, %v1660
      %v1681 = vsel %vm905, %v1592, 0
      %v1684 = vsel %vm905, %v1594, 0
      %v1687 = vsel %vm905, %v1596, 0
      %v1690 = vsel %vm905, %v1598, 0
      %v1693 = vsel %vm905, %v1600, 0
      %1695 = vmatprep.subr.bf16.mxu0 0
      %1696 = vmatpush1.bf16.msra.mxu0 %v1662
      %1697 = vmatprep.subr.bf16.mxu0 0
      %1698 = vmatpush1.bf16.msra.mxu0 %v1663
      %1699 = vmatprep.subr.bf16.mxu0 0
      %1700 = vmatpush1.bf16.msra.mxu0 %v1664
      %1701 = vmatprep.subr.bf16.mxu0 0
      %1702 = vmatpush1.bf16.msra.mxu0 %v1665
      %1703 = vmatprep.subr.bf16.mxu0 0
      %1704 = vmatpush1.bf16.msra.mxu0 %v1666
      %1705 = vmatprep.subr.bf16.mxu0 0
      %1706 = vmatpush1.bf16.msra.mxu0 %v1667
      %1707 = vmatprep.subr.bf16.mxu0 0
      %1708 = vmatpush1.bf16.msra.mxu0 %v1668
      %1709 = vmatprep.subr.bf16.mxu0 0
      %1710 = vmatpush1.bf16.msra.mxu0 %v1669
      %1711 = vmatprep.subr.bf16.mxu0 0
      %1712 = vmatpush1.bf16.msra.mxu0 %v1670
      %1713 = vmatprep.subr.bf16.mxu0 0
      %1714 = vmatpush1.bf16.msra.mxu0 0
      %1715 = vmatprep.subr.bf16.mxu0 0
      %1716 = vmatpush1.bf16.msra.mxu0 0
      %1717 = vmatprep.subr.bf16.mxu0 0
      %1718 = vmatpush1.bf16.msra.mxu0 0
      %1719 = vmatprep.subr.bf16.mxu0 0
      %1720 = vmatpush1.bf16.msra.mxu0 0
      %1721 = vmatprep.subr.bf16.mxu0 0
      %1722 = vmatpush1.bf16.msra.mxu0 0
      %1723 = vmatprep.subr.bf16.mxu0 0
      %1724 = vmatpush1.bf16.msra.mxu0 0
      %1725 = vmatprep.subr.bf16.mxu0 0
      %1726 = vmatpush1.bf16.msra.mxu0 0
      %1727 = vmatprep.mubr.bf16.mxu0 %v1681
      %1728 = vmatmul.mubr.bf16.gmra.mrb[0].mxu0 %v1591
      %v1729 = vpop.f32.mrb[0].mxu0
      %v1730 = vadd.f32 %v1624, %v1729
      %v1731 = vpop.f32.mrb[0].mxu0
      %v1732 = vpop.f32.mrb[0].mxu0
      %v1733 = vadd.f32 %v1624, %v1732
      %v1734 = vpop.f32.mrb[0].mxu0
      %1735 = vmatprep.mubr.bf16.mxu0 %v1684
      %1736 = vmatmul.mubr.bf16.gmra.mrb[0].mxu0 %v1593
      %v1737 = vpop.f32.mrb[0].mxu0
      %v1738 = vadd.f32 %v1624, %v1737
      %v1739 = vpop.f32.mrb[0].mxu0
      %v1740 = vpop.f32.mrb[0].mxu0
      %v1741 = vadd.f32 %v1624, %v1740
      %v1742 = vpop.f32.mrb[0].mxu0
      %1743 = vmatprep.mubr.bf16.mxu0 %v1687
      %1744 = vmatmul.mubr.bf16.gmra.mrb[0].mxu0 %v1595
      %v1745 = vpop.f32.mrb[0].mxu0
      %v1746 = vadd.f32 %v1624, %v1745
      %v1747 = vpop.f32.mrb[0].mxu0
      %v1748 = vpop.f32.mrb[0].mxu0
      %v1749 = vadd.f32 %v1624, %v1748
      %v1750 = vpop.f32.mrb[0].mxu0
      %1751 = vmatprep.mubr.bf16.mxu0 %v1690
      %1752 = vmatmul.mubr.bf16.gmra.mrb[0].mxu0 %v1597
      %v1753 = vpop.f32.mrb[0].mxu0
      %v1754 = vadd.f32 %v1624, %v1753
      %v1755 = vpop.f32.mrb[0].mxu0
      %v1756 = vpop.f32.mrb[0].mxu0
      %v1757 = vadd.f32 %v1624, %v1756
      %v1758 = vpop.f32.mrb[0].mxu0
      %1759 = vmatprep.mubr.bf16.mxu0 %v1693
      %1760 = vmatmul.mubr.bf16.gmra.mrb[0].mxu0 %v1599
      %v1761 = vpop.f32.mrb[0].mxu0
      %v1762 = vadd.f32 %v1624, %v1761
      %v1763 = vpop.f32.mrb[0].mxu0
      %v1764 = vpop.f32.mrb[0].mxu0
      %v1765 = vadd.f32 %v1624, %v1764
      %v1766 = vpop.f32.mrb[0].mxu0
      %1767 = vdwg.mxu0
      %v1768 = vadd.f32 %v1730, %v583
      %v1769 = vadd.f32 %v1733, %v586
      %v1770 = vadd.f32 %v1738, %v591
      %v1771 = vadd.f32 %v1741, %v594
      %v1772 = vadd.f32 %v1746, %v599
      %v1773 = vadd.f32 %v1749, %v602
      %v1774 = vadd.f32 %v1754, %v607
      %v1775 = vadd.f32 %v1757, %v610
      %v1776 = vadd.f32 %v1762, %v615
      %v1777 = vadd.f32 %v1765, %v618
      %v1778 = vpack.c.bf16 %v1769, %v1768
      %v1779 = vpack.c.bf16 %v1771, %v1770
      %v1780 = vpack.c.bf16 %v1773, %v1772
      %v1781 = vpack.c.bf16 %v1775, %v1774
      %v1782 = vpack.c.bf16 %v1777, %v1776
      %v1788 = vunpack.c.l.b16 %v1778
      %v1789 = vunpack.c.h.b16 %v1778
      %v1790 = vunpack.c.l.b16 %v1779
      %v1791 = vunpack.c.h.b16 %v1779
      %v1792 = vunpack.c.l.b16 %v1780
      %v1793 = vunpack.c.h.b16 %v1780
      %v1794 = vunpack.c.l.b16 %v1781
      %v1795 = vunpack.c.h.b16 %v1781
      %v1796 = vunpack.c.l.b16 %v1782
      %v1797 = vunpack.c.h.b16 %v1782
      %v1798 = vpack.c.b16 %v1788, %v1788
      %v1799 = vpack.c.b16 %v1789, %v1789
      %v1800 = vpack.c.b16 %v1790, %v1790
      %v1801 = vpack.c.b16 %v1791, %v1791
      %v1802 = vpack.c.b16 %v1792, %v1792
      %v1803 = vpack.c.b16 %v1793, %v1793
      %v1804 = vpack.c.b16 %v1794, %v1794
      %v1805 = vpack.c.b16 %v1795, %v1795
      %v1806 = vpack.c.b16 %v1796, %v1796
      %v1807 = vpack.c.b16 %v1797, %v1797
      %vm1818 = vcmask 60416
      %1819 = vst.msk [vmem:[%s325] sm:$0xf] %vm1818, %v1798
      %1820 = vst.msk [vmem:[%s325 + $0x4] sm:$0xf] %vm1818, %v1799
      %1821 = vst.msk [vmem:[%s325 + $0x8] sm:$0xf] %vm1818, %v1800
      %1822 = vst.msk [vmem:[%s325 + $0xc] sm:$0xf] %vm1818, %v1801
      %1823 = vst.msk [vmem:[%s325 + $0x10] sm:$0xf] %vm1818, %v1802
      %1824 = vst.msk [vmem:[%s325 + $0x14] sm:$0xf] %vm1818, %v1803
      %1825 = vst.msk [vmem:[%s325 + $0x18] sm:$0xf] %vm1818, %v1804
      %1826 = vst.msk [vmem:[%s325 + $0x1c] sm:$0xf] %vm1818, %v1805
      %1827 = vst.msk [vmem:[%s325 + $0x20] sm:$0xf] %vm1818, %v1806
      %1828 = vst.msk [vmem:[%s325 + $0x24] sm:$0xf] %vm1818, %v1807
      %p1829 = scmp.lt.s32.totalorder %s19, 1
      %s1830 = scalar_select %p1829, %s19, 1
      %s1831 = smul.addr %s1830, 10
      %s1832 = smul.addr %s1831, 4
      %s1833 = scalar_lea.vmem %s8, %s1832
      // Predicated region
      $region53: #{shake_block_forward.1} parent=51 // pred_check
        %p1834 = pneg %p215
      $region54: #{shake_block_forward.1} parent=51 // pred_check_branch
        %1836 = sbr.rel (%p1834) target = $region56
      $region55: #{shake_block_forward.1} parent=51 // pred_region
        _
      $region56: #{shake_block_forward.1} parent=51 // pred_fallthru
        _
    $region52: #{shake_block_forward.1} parent=5 // pred_fallthru
      _
    %p1837 = scmp.le.s32.totalorder 2, %s14
    // Predicated region
    $region57: #{shake_block_forward.1} parent=5 // pred_check
      %p1838 = pneg %p1837
    $region58: #{shake_block_forward.1} parent=5 // pred_check_branch
      %1840 = sbr.rel (%p1838) target = $region60
    $region59: #{shake_block_forward.1} parent=5 // pred_region
      %s1841 = ssub.s32 %s14, 2
      // Predicated region
      $region61: #{shake_block_forward.1} parent=59 // pred_check
        %p1842 = pneg %p221
      $region62: #{shake_block_forward.1} parent=59 // pred_check_branch
        %1844 = sbr.rel (%p1842) target = $region64
      $region63: #{shake_block_forward.1} parent=59 // pred_region
        %p1845 = scmp.lt.s32.totalorder %s20, 1
        %s1846 = scalar_select %p1845, %s20, 1
        %s1847 = smul.addr %s1846, 10
        %s1848 = smul.addr %s1847, 4
        %s1849 = scalar_lea.vmem %s8, %s1848
      $region64: #{shake_block_forward.1} parent=59 // pred_fallthru
        _
    $region60: #{shake_block_forward.1} parent=5 // pred_fallthru
      _
  $region6: #{shake_block_forward.1} parent=0 // loop_footer
    %s18 = sadd.s32 1, %s14
  $region7: #{shake_block_forward.1} parent=0 // loop_footer_branch
    %13 = sbr.rel target = $region3
  $region8: #{shake_block_forward.1} parent=0 // loop_exit
    _

</llo_original>
